<compile_context>
chip_gen: v7x
topology: tpu7x:2x2x1
jax: 0.10.0
libtpu: 0.0.40
codegen_flags: <defaults>
</compile_context>

<pallas_src>
import functools

import jax
import jax.numpy as jnp
from jax.experimental import pallas as pl
from jax.experimental.pallas import tpu as pltpu


# ------------------------------ kernel helpers -------------------------------
def _gru_step(g, h, whrz, weh):
    """One recurrent update.  g: (TB, 4S) x-side pre-activations, h: (TB, S)."""
    S = whrz.shape[1] // 2
    # Packed r|z h-matmul (one MXU push) + one fused sigmoid over both gates.
    pre_rz = g[:, 0:2 * S] + jnp.dot(h, whrz, preferred_element_type=jnp.float32)
    rz = jax.nn.sigmoid(pre_rz)                       # (TB, 2S)
    r = rz[:, 0:S]                                    # whole-vreg slab picks
    z = rz[:, S:2 * S]
    # enco gate operand is (h * r) -> its matmul must stay inside the step.
    hl = jnp.tanh(g[:, 2 * S:3 * S]
                  + jnp.dot(h * r, weh, preferred_element_type=jnp.float32))
    # Exact PyTorch semantics: adds (1 - z), does NOT multiply it by h.
    return z * hl + (1.0 - z) + h


def _decode(g, nh, wdh, b, out_dim):
    """policy_decoder(cat(x, nh)) -> relu -> softmax.  Padded lanes are masked."""
    S = wdh.shape[1]
    logits = (g[:, 3 * S:4 * S]
              + jnp.dot(nh, wdh, preferred_element_type=jnp.float32)
              + b)
    y = jnp.maximum(logits, 0.0)                      # F.relu
    lane = jax.lax.broadcasted_iota(jnp.int32, y.shape, 1)
    y = jnp.where(lane < out_dim, y, jnp.float32(-1e30))   # mask padded lanes
    y = y - jnp.max(y, axis=-1, keepdims=True)
    e = jnp.exp(y)
    return e / jnp.sum(e, axis=-1, keepdims=True)     # exact divide (sum==1 tight)


# --------------------------------- kernels ------------------------------------
def _policy_memory_kernel(hist_ref, x_ref, h0_ref, wx_ref, whrz_ref, weh_ref,
                          wdh_ref, b_ref, y_ref, hout_ref, *, out_dim):
    """Full forward over a (time-major) history for one batch tile.

    hist_ref : (T, TB, IN)   history state vectors, time-major
    x_ref    : (TB, IN)      current state vectors
    h0_ref   : (TB, S)       initial hidden (lanes 0:H meaningful, rest zero)
    wx_ref   : (IN, 4S)      packed x-side weights [r | z | enco | dec], 128-lane slabs
    whrz_ref : (S, 2S)       packed h-side gate weights [r | z]
    weh_ref  : (S, S)        enco h-weight
    wdh_ref  : (S, S)        decoder hidden-part weight (cols 0:OUT meaningful)
    b_ref    : (1, S)        decoder bias (lanes 0:OUT meaningful)
    y_ref    : (TB, S)       softmax policy output (lane-dense; sliced in wrapper)
    hout_ref : (TB, S)       next_hidden carry output
    """
    T = hist_ref.shape[0]
    wx = wx_ref[...]
    whrz = whrz_ref[...]
    weh = weh_ref[...]

    h = h0_ref[...]
    # The x-side dots do not depend on h, so they sit off the serial chain and the
    # scheduler overlaps them with the previous step's EUP/VPU work.  (At very large
    # B*T they could be fused into a single (T*TB, IN) @ (IN, 4S) dot.)
    for t in range(T):                               # fully unrolled (T static)
        g_t = jnp.dot(hist_ref[t].astype(wx.dtype), wx,
                      preferred_element_type=jnp.float32)
        h = _gru_step(g_t, h, whrz, weh)

    g_x = jnp.dot(x_ref[...].astype(wx.dtype), wx,
                  preferred_element_type=jnp.float32)
    nh = _gru_step(g_x, h, whrz, weh)

    hout_ref[...] = nh
    y_ref[...] = _decode(g_x, nh, wdh_ref[...], b_ref[...], out_dim)


def _policy_memory_step_kernel(x_ref, h0_ref, wx_ref, whrz_ref, weh_ref,
                               wdh_ref, b_ref, y_ref, hout_ref, *, out_dim):
    """Single recurrent update from a carried hidden state (no history re-run)."""
    wx = wx_ref[...]
    g_x = jnp.dot(x_ref[...].astype(wx.dtype), wx,
                  preferred_element_type=jnp.float32)
    nh = _gru_step(g_x, h0_ref[...], whrz_ref[...], weh_ref[...])
    hout_ref[...] = nh
    y_ref[...] = _decode(g_x, nh, wdh_ref[...], b_ref[...], out_dim)


# --------------------------- one-time param prep -----------------------------
def prepare_params(params, mxu_dtype=jnp.float32):
    """Pack / pre-transpose / 128-lane-pad weights into kernel layout ONCE."""
    IN = params["wrx"].shape[1]
    H = params["wrh"].shape[0]
    OUT = params["wdec"].shape[0]
    rup = lambda n: ((n + 127) // 128) * 128
    S = max(rup(H), rup(OUT))                          # slab width == padded hidden

    def slab(w_t):                                     # pad cols up to S
        w_t = w_t.astype(jnp.float32)
        return jnp.pad(w_t, ((0, 0), (0, S - w_t.shape[1])))

    def rowpad(w):                                     # pad rows up to S
        return jnp.pad(w, ((0, S - w.shape[0]), (0, 0)))

    wdec = params["wdec"].astype(jnp.float32)          # (OUT, IN + H)
    prepped = {
        # (IN, 4S): [wrx | wzx | wex | wdec_input_part], transposed, slab-aligned.
        "wx_all": jnp.concatenate(
            [slab(params["wrx"].T), slab(params["wzx"].T),
             slab(params["wex"].T), slab(wdec[:, :IN].T)],
            axis=1).astype(mxu_dtype),
        # (S, 2S): [wrh | wzh], transposed, slab-aligned; rows >= H are zero.
        "wh_rz": rowpad(jnp.concatenate(
            [slab(params["wrh"].T), slab(params["wzh"].T)], axis=1)),
        "weh": rowpad(slab(params["weh"].T)),          # (S, S)
        "wdh": rowpad(slab(wdec[:, IN:].T)),           # (S, S), cols 0:OUT meaningful
        "bdec": slab(params["bdec"].reshape(1, OUT)),  # (1, S)
        "dims": (IN, H, OUT),                          # static python ints
    }
    return prepped


# ------------------------------ jitted drivers --------------------------------
def _batch_tiling(B):
    Bp = max(8, -(-B // 8) * 8)          # pad to sublane multiple
    TB = min(Bp, 128)                    # batch tile (<=128 rows per grid step)
    Bp = -(-Bp // TB) * TB               # pad to tile multiple
    return Bp, TB


@functools.partial(jax.jit, static_argnames=("out_dim", "h_dim"))
def _forward_batched(history, x, h0, wx, whrz, weh, wdh, b, out_dim, h_dim):
    B, T, IN = history.shape
    S = wx.shape[1] // 4
    Bp, TB = _batch_tiling(B)
    nb = Bp // TB

    hist = jnp.pad(history.astype(jnp.float32), ((0, Bp - B), (0, 0), (0, 0)))
    hist = jnp.transpose(hist, (1, 0, 2))                    # (T, Bp, IN) time-major
    xb = jnp.pad(x.astype(jnp.float32), ((0, Bp - B), (0, 0)))
    if h0 is None:
        h0b = jnp.zeros((Bp, S), jnp.float32)
    else:
        h0b = jnp.pad(h0.astype(jnp.float32), ((0, Bp - B), (0, S - h_dim)))

    kernel = functools.partial(_policy_memory_kernel, out_dim=out_dim)
    y, hout = pl.pallas_call(
        kernel,
        out_shape=(jax.ShapeDtypeStruct((Bp, S), jnp.float32),
                   jax.ShapeDtypeStruct((Bp, S), jnp.float32)),
        grid_spec=pltpu.PrefetchScalarGridSpec(
            num_scalar_prefetch=0,
            grid=(nb,),
            in_specs=[
                pl.BlockSpec((T, TB, IN), lambda i: (0, i, 0)),
                pl.BlockSpec((TB, IN), lambda i: (i, 0)),
                pl.BlockSpec((TB, S), lambda i: (i, 0)),
                pl.BlockSpec((IN, 4 * S), lambda i: (0, 0)),
                pl.BlockSpec((S, 2 * S), lambda i: (0, 0)),
                pl.BlockSpec((S, S), lambda i: (0, 0)),
                pl.BlockSpec((S, S), lambda i: (0, 0)),
                pl.BlockSpec((1, S), lambda i: (0, 0)),
            ],
            out_specs=[pl.BlockSpec((TB, S), lambda i: (i, 0)),
                       pl.BlockSpec((TB, S), lambda i: (i, 0))],
        ),
        compiler_params=pltpu.CompilerParams(
            dimension_semantics=("parallel",)),          # megacore-shard batch tiles
    )(hist, xb, h0b, wx, whrz, weh, wdh, b)
    return y[:B, :out_dim], hout[:B, :h_dim]


@functools.partial(jax.jit, static_argnames=("out_dim", "h_dim"))
def _step_batched(x, h, wx, whrz, weh, wdh, b, out_dim, h_dim):
    B, IN = x.shape
    S = wx.shape[1] // 4
    Bp, TB = _batch_tiling(B)
    nb = Bp // TB

    xb = jnp.pad(x.astype(jnp.float32), ((0, Bp - B), (0, 0)))
    hb = jnp.pad(h.astype(jnp.float32), ((0, Bp - B), (0, S - h_dim)))

    kernel = functools.partial(_policy_memory_step_kernel, out_dim=out_dim)
    y, hout = pl.pallas_call(
        kernel,
        out_shape=(jax.ShapeDtypeStruct((Bp, S), jnp.float32),
                   jax.ShapeDtypeStruct((Bp, S), jnp.float32)),
        grid_spec=pltpu.PrefetchScalarGridSpec(
            num_scalar_prefetch=0,
            grid=(nb,),
            in_specs=[
                pl.BlockSpec((TB, IN), lambda i: (i, 0)),
                pl.BlockSpec((TB, S), lambda i: (i, 0)),
                pl.BlockSpec((IN, 4 * S), lambda i: (0, 0)),
                pl.BlockSpec((S, 2 * S), lambda i: (0, 0)),
                pl.BlockSpec((S, S), lambda i: (0, 0)),
                pl.BlockSpec((S, S), lambda i: (0, 0)),
                pl.BlockSpec((1, S), lambda i: (0, 0)),
            ],
            out_specs=[pl.BlockSpec((TB, S), lambda i: (i, 0)),
                       pl.BlockSpec((TB, S), lambda i: (i, 0))],
        ),
        compiler_params=pltpu.CompilerParams(
            dimension_semantics=("parallel",)),
    )(xb, hb, wx, whrz, weh, wdh, b)
    return y[:B, :out_dim], hout[:B, :h_dim]


# ------------------------------- public API -----------------------------------
def policy_memory_forward(history, x, prepped, h0=None):
    """history: (B, T, IN) or (T, IN); x: (B, IN) or (IN,); optional h0: (B, H)/(H,).

    Returns (y, next_hidden).  next_hidden can be fed back as `h` to
    policy_memory_step() to avoid re-running the history on the next call."""
    _, H, OUT = prepped["dims"]
    squeeze = x.ndim == 1
    if squeeze:
        history, x = history[None], x[None]
        h0 = None if h0 is None else h0[None]
    y, nh = _forward_batched(history, x, h0, prepped["wx_all"], prepped["wh_rz"],
                             prepped["weh"], prepped["wdh"], prepped["bdec"],
                             out_dim=OUT, h_dim=H)
    return (y[0], nh[0]) if squeeze else (y, nh)


def policy_memory_step(x, h, prepped):
    """One recurrent update from a carried hidden state (append-only history)."""
    _, H, OUT = prepped["dims"]
    squeeze = x.ndim == 1
    if squeeze:
        x, h = x[None], h[None]
    y, nh = _step_batched(x, h, prepped["wx_all"], prepped["wh_rz"], prepped["weh"],
                          prepped["wdh"], prepped["bdec"], out_dim=OUT, h_dim=H)
    return (y[0], nh[0]) if squeeze else (y, nh)


# ----------------------------- parameter init --------------------------------
def _xavier_uniform(key, out_f, in_f):
    bound = jnp.sqrt(6.0 / (in_f + out_f))
    return jax.random.uniform(key, (out_f, in_f), jnp.float32, -bound, bound)


def init_params(key, n_in, n_hidden, n_out):
    ks = jax.random.split(key, 8)
    return {
        "wrx": _xavier_uniform(ks[0], n_hidden, n_in),
        "wrh": _xavier_uniform(ks[1], n_hidden, n_hidden),
        "wzx": _xavier_uniform(ks[2], n_hidden, n_in),
        "wzh": _xavier_uniform(ks[3], n_hidden, n_hidden),
        "wex": _xavier_uniform(ks[4], n_hidden, n_in),
        "weh": _xavier_uniform(ks[5], n_hidden, n_hidden),
        "wdec": _xavier_uniform(ks[6], n_out, n_hidden + n_in),
        "bdec": jax.random.uniform(
            ks[7], (n_out,), jnp.float32,
            -1.0 / jnp.sqrt(n_hidden + n_in), 1.0 / jnp.sqrt(n_hidden + n_in)),
    }


# ----------------------------- pure-JAX reference ----------------------------
def _reference_single(history, x, params):
    H = params["wrh"].shape[0]

    def step(xr, h):
        r = jax.nn.sigmoid(xr @ params["wrx"].T + h @ params["wrh"].T)
        z = jax.nn.sigmoid(xr @ params["wzx"].T + h @ params["wzh"].T)
        hl = jnp.tanh(xr @ params["wex"].T + (h * r) @ params["weh"].T)
        return z * hl + (1.0 - z) + h

    h = jnp.zeros((H,), jnp.float32)
    for t in range(history.shape[0]):
        h = step(history[t], h)
    nh = step(x, h)
    cat = jnp.concatenate([x, nh])
    y = cat @ params["wdec"].T + params["bdec"]
    y = jnp.maximum(y, 0.0)
    return jax.nn.softmax(y), nh


if __name__ == "__main__":
    IN, HID, OUT, T, B = 64, 32, 16, 4, 8   # small shapes consistent with the module

    key = jax.random.PRNGKey(0)
    kp, kh, kx = jax.random.split(key, 3)
    params = init_params(kp, IN, HID, OUT)
    prepped = prepare_params(params)        # one-time: weights already in kernel layout

    # B independent sequences: history of T precomputed state vectors + current vector.
    history = jax.random.normal(kh, (B, T, IN), jnp.float32)
    x = jax.random.normal(kx, (B, IN), jnp.float32)

    # Full forward (recurrence from scratch over the history).
    y, nh = policy_memory_forward(history, x, prepped)
    y, nh = jax.block_until_ready((y, nh))

    y_ref, nh_ref = jax.vmap(_reference_single, in_axes=(0, 0, None))(history, x, params)
    assert y.shape == (B, OUT) and nh.shape == (B, HID)
    assert jnp.allclose(y, y_ref, atol=2e-3, rtol=2e-3), "policy mismatch vs reference"
    assert jnp.allclose(nh, nh_ref, atol=2e-3, rtol=2e-3), "hidden mismatch vs reference"
    assert jnp.allclose(jnp.sum(y, axis=-1), 1.0, atol=1e-4)   # exact-divide softmax

    # Carried-hidden incremental path == full recompute (append-only history).
    h = jnp.zeros((B, HID), jnp.float32)
    for t in range(T):
        _, h = policy_memory_step(history[:, t, :], h, prepped)
    y_inc, nh_inc = policy_memory_step(x, h, prepped)
    y_inc, nh_inc = jax.block_until_ready((y_inc, nh_inc))
    assert jnp.allclose(y_inc, y, atol=1e-3, rtol=1e-3), "incremental path mismatch"
    assert jnp.allclose(nh_inc, nh, atol=1e-3, rtol=1e-3), "incremental hidden mismatch"

    # Unbatched convenience path (matches row 0 of the batched call).
    y1, nh1 = policy_memory_forward(history[0], x[0], prepped)
    assert jnp.allclose(y1, y[0], atol=1e-5)

    print("KERNEL_OK")
</pallas_src>

<mosaic_0001>
module attributes {stable_mosaic.version = 11 : i64} {
  func.func @_policy_memory_kernel(%arg0: i32, %arg1: memref<4x8x64xf32, #tpu.memory_space<vmem>>, %arg2: memref<8x64xf32, #tpu.memory_space<vmem>>, %arg3: memref<8x128xf32, #tpu.memory_space<vmem>>, %arg4: memref<64x512xf32, #tpu.memory_space<vmem>>, %arg5: memref<128x256xf32, #tpu.memory_space<vmem>>, %arg6: memref<128x128xf32, #tpu.memory_space<vmem>>, %arg7: memref<128x128xf32, #tpu.memory_space<vmem>>, %arg8: memref<1x128xf32, #tpu.memory_space<vmem>>, %arg9: memref<8x128xf32, #tpu.memory_space<vmem>>, %arg10: memref<8x128xf32, #tpu.memory_space<vmem>>) attributes {dimension_semantics = [#tpu.dimension_semantics<parallel>], iteration_bounds = array<i64: 1>, scalar_prefetch = 0 : i64, scratch_operands = 0 : i64, tpu.core_type = #tpu.core_type<tc>, window_params = [{transform_indices = @transform_0, window_bounds = array<i64: 4, 8, 64>}, {transform_indices = @transform_1, window_bounds = array<i64: 8, 64>}, {transform_indices = @transform_2, window_bounds = array<i64: 8, 128>}, {pipeline_mode = #tpu.pipeline_mode<synchronous>, transform_indices = @transform_3, window_bounds = array<i64: 64, 512>}, {pipeline_mode = #tpu.pipeline_mode<synchronous>, transform_indices = @transform_4, window_bounds = array<i64: 128, 256>}, {pipeline_mode = #tpu.pipeline_mode<synchronous>, transform_indices = @transform_5, window_bounds = array<i64: 128, 128>}, {pipeline_mode = #tpu.pipeline_mode<synchronous>, transform_indices = @transform_6, window_bounds = array<i64: 128, 128>}, {pipeline_mode = #tpu.pipeline_mode<synchronous>, transform_indices = @transform_7, window_bounds = array<i64: 1, 128>}, {transform_indices = @transform_8, window_bounds = array<i64: 8, 128>}, {transform_indices = @transform_9, window_bounds = array<i64: 8, 128>}]} {
    %c0 = arith.constant 0 : index
    %c0_0 = arith.constant 0 : index
    %0 = vector.load %arg4[%c0, %c0_0] : memref<64x512xf32, #tpu.memory_space<vmem>>, vector<64x512xf32>
    %c0_1 = arith.constant 0 : index
    %c0_2 = arith.constant 0 : index
    %1 = vector.load %arg5[%c0_1, %c0_2] : memref<128x256xf32, #tpu.memory_space<vmem>>, vector<128x256xf32>
    %c0_3 = arith.constant 0 : index
    %c0_4 = arith.constant 0 : index
    %2 = vector.load %arg6[%c0_3, %c0_4] : memref<128x128xf32, #tpu.memory_space<vmem>>, vector<128x128xf32>
    %c0_5 = arith.constant 0 : index
    %c0_6 = arith.constant 0 : index
    %3 = vector.load %arg3[%c0_5, %c0_6] : memref<8x128xf32, #tpu.memory_space<vmem>>, vector<8x128xf32>
    %c0_7 = arith.constant 0 : index
    %c0_8 = arith.constant 0 : index
    %c0_9 = arith.constant 0 : index
    %4 = vector.load %arg1[%c0_7, %c0_8, %c0_9] : memref<4x8x64xf32, #tpu.memory_space<vmem>>, vector<1x8x64xf32>
    %5 = vector.shape_cast %4 : vector<1x8x64xf32> to vector<8x64xf32>
    %cst = arith.constant dense<0.000000e+00> : vector<8x512xf32>
    %6 = tpu.matmul %5, %0, %cst {dimension_numbers = #tpu.dot_dimension_numbers<[1], [0], [0], [1], [0, 0, 1, 1], [], []>} : vector<8x64xf32>, vector<64x512xf32>, vector<8x512xf32> -> vector<8x512xf32>
    %7 = vector.extract_strided_slice %6 {offsets = [0, 0], sizes = [8, 256], strides = [1, 1]} : vector<8x512xf32> to vector<8x256xf32>
    %cst_10 = arith.constant dense<0.000000e+00> : vector<8x256xf32>
    %8 = tpu.matmul %3, %1, %cst_10 {dimension_numbers = #tpu.dot_dimension_numbers<[1], [0], [0], [1], [0, 0, 1, 1], [], []>} : vector<8x128xf32>, vector<128x256xf32>, vector<8x256xf32> -> vector<8x256xf32>
    %9 = arith.addf %7, %8 : vector<8x256xf32>
    %10 = arith.negf %9 : vector<8x256xf32>
    %11 = math.exp %10 : vector<8x256xf32>
    %cst_11 = arith.constant 1.000000e+00 : f32
    %12 = vector.broadcast %cst_11 : f32 to vector<8x256xf32>
    %13 = arith.addf %12, %11 : vector<8x256xf32>
    %14 = arith.divf %12, %13 : vector<8x256xf32>
    %15 = vector.extract_strided_slice %14 {offsets = [0, 0], sizes = [8, 128], strides = [1, 1]} : vector<8x256xf32> to vector<8x128xf32>
    %16 = vector.extract_strided_slice %14 {offsets = [0, 128], sizes = [8, 128], strides = [1, 1]} : vector<8x256xf32> to vector<8x128xf32>
    %17 = vector.extract_strided_slice %6 {offsets = [0, 256], sizes = [8, 128], strides = [1, 1]} : vector<8x512xf32> to vector<8x128xf32>
    %18 = arith.mulf %3, %15 : vector<8x128xf32>
    %cst_12 = arith.constant dense<0.000000e+00> : vector<8x128xf32>
    %19 = tpu.matmul %18, %2, %cst_12 {dimension_numbers = #tpu.dot_dimension_numbers<[1], [0], [0], [1], [0, 0, 1, 1], [], []>} : vector<8x128xf32>, vector<128x128xf32>, vector<8x128xf32> -> vector<8x128xf32>
    %20 = arith.addf %17, %19 : vector<8x128xf32>
    %21 = math.tanh %20 : vector<8x128xf32>
    %22 = arith.mulf %16, %21 : vector<8x128xf32>
    %cst_13 = arith.constant 1.000000e+00 : f32
    %23 = vector.broadcast %cst_13 : f32 to vector<8x128xf32>
    %24 = arith.subf %23, %16 : vector<8x128xf32>
    %25 = arith.addf %22, %24 : vector<8x128xf32>
    %26 = arith.addf %25, %3 : vector<8x128xf32>
    %c1 = arith.constant 1 : index
    %c0_14 = arith.constant 0 : index
    %c0_15 = arith.constant 0 : index
    %27 = vector.load %arg1[%c1, %c0_14, %c0_15] : memref<4x8x64xf32, #tpu.memory_space<vmem>>, vector<1x8x64xf32>
    %28 = vector.shape_cast %27 : vector<1x8x64xf32> to vector<8x64xf32>
    %cst_16 = arith.constant dense<0.000000e+00> : vector<8x512xf32>
    %29 = tpu.matmul %28, %0, %cst_16 {dimension_numbers = #tpu.dot_dimension_numbers<[1], [0], [0], [1], [0, 0, 1, 1], [], []>} : vector<8x64xf32>, vector<64x512xf32>, vector<8x512xf32> -> vector<8x512xf32>
    %30 = vector.extract_strided_slice %29 {offsets = [0, 0], sizes = [8, 256], strides = [1, 1]} : vector<8x512xf32> to vector<8x256xf32>
    %cst_17 = arith.constant dense<0.000000e+00> : vector<8x256xf32>
    %31 = tpu.matmul %26, %1, %cst_17 {dimension_numbers = #tpu.dot_dimension_numbers<[1], [0], [0], [1], [0, 0, 1, 1], [], []>} : vector<8x128xf32>, vector<128x256xf32>, vector<8x256xf32> -> vector<8x256xf32>
    %32 = arith.addf %30, %31 : vector<8x256xf32>
    %33 = arith.negf %32 : vector<8x256xf32>
    %34 = math.exp %33 : vector<8x256xf32>
    %cst_18 = arith.constant 1.000000e+00 : f32
    %35 = vector.broadcast %cst_18 : f32 to vector<8x256xf32>
    %36 = arith.addf %35, %34 : vector<8x256xf32>
    %37 = arith.divf %35, %36 : vector<8x256xf32>
    %38 = vector.extract_strided_slice %37 {offsets = [0, 0], sizes = [8, 128], strides = [1, 1]} : vector<8x256xf32> to vector<8x128xf32>
    %39 = vector.extract_strided_slice %37 {offsets = [0, 128], sizes = [8, 128], strides = [1, 1]} : vector<8x256xf32> to vector<8x128xf32>
    %40 = vector.extract_strided_slice %29 {offsets = [0, 256], sizes = [8, 128], strides = [1, 1]} : vector<8x512xf32> to vector<8x128xf32>
    %41 = arith.mulf %26, %38 : vector<8x128xf32>
    %cst_19 = arith.constant dense<0.000000e+00> : vector<8x128xf32>
    %42 = tpu.matmul %41, %2, %cst_19 {dimension_numbers = #tpu.dot_dimension_numbers<[1], [0], [0], [1], [0, 0, 1, 1], [], []>} : vector<8x128xf32>, vector<128x128xf32>, vector<8x128xf32> -> vector<8x128xf32>
    %43 = arith.addf %40, %42 : vector<8x128xf32>
    %44 = math.tanh %43 : vector<8x128xf32>
    %45 = arith.mulf %39, %44 : vector<8x128xf32>
    %cst_20 = arith.constant 1.000000e+00 : f32
    %46 = vector.broadcast %cst_20 : f32 to vector<8x128xf32>
    %47 = arith.subf %46, %39 : vector<8x128xf32>
    %48 = arith.addf %45, %47 : vector<8x128xf32>
    %49 = arith.addf %48, %26 : vector<8x128xf32>
    %c2 = arith.constant 2 : index
    %c0_21 = arith.constant 0 : index
    %c0_22 = arith.constant 0 : index
    %50 = vector.load %arg1[%c2, %c0_21, %c0_22] : memref<4x8x64xf32, #tpu.memory_space<vmem>>, vector<1x8x64xf32>
    %51 = vector.shape_cast %50 : vector<1x8x64xf32> to vector<8x64xf32>
    %cst_23 = arith.constant dense<0.000000e+00> : vector<8x512xf32>
    %52 = tpu.matmul %51, %0, %cst_23 {dimension_numbers = #tpu.dot_dimension_numbers<[1], [0], [0], [1], [0, 0, 1, 1], [], []>} : vector<8x64xf32>, vector<64x512xf32>, vector<8x512xf32> -> vector<8x512xf32>
    %53 = vector.extract_strided_slice %52 {offsets = [0, 0], sizes = [8, 256], strides = [1, 1]} : vector<8x512xf32> to vector<8x256xf32>
    %cst_24 = arith.constant dense<0.000000e+00> : vector<8x256xf32>
    %54 = tpu.matmul %49, %1, %cst_24 {dimension_numbers = #tpu.dot_dimension_numbers<[1], [0], [0], [1], [0, 0, 1, 1], [], []>} : vector<8x128xf32>, vector<128x256xf32>, vector<8x256xf32> -> vector<8x256xf32>
    %55 = arith.addf %53, %54 : vector<8x256xf32>
    %56 = arith.negf %55 : vector<8x256xf32>
    %57 = math.exp %56 : vector<8x256xf32>
    %cst_25 = arith.constant 1.000000e+00 : f32
    %58 = vector.broadcast %cst_25 : f32 to vector<8x256xf32>
    %59 = arith.addf %58, %57 : vector<8x256xf32>
    %60 = arith.divf %58, %59 : vector<8x256xf32>
    %61 = vector.extract_strided_slice %60 {offsets = [0, 0], sizes = [8, 128], strides = [1, 1]} : vector<8x256xf32> to vector<8x128xf32>
    %62 = vector.extract_strided_slice %60 {offsets = [0, 128], sizes = [8, 128], strides = [1, 1]} : vector<8x256xf32> to vector<8x128xf32>
    %63 = vector.extract_strided_slice %52 {offsets = [0, 256], sizes = [8, 128], strides = [1, 1]} : vector<8x512xf32> to vector<8x128xf32>
    %64 = arith.mulf %49, %61 : vector<8x128xf32>
    %cst_26 = arith.constant dense<0.000000e+00> : vector<8x128xf32>
    %65 = tpu.matmul %64, %2, %cst_26 {dimension_numbers = #tpu.dot_dimension_numbers<[1], [0], [0], [1], [0, 0, 1, 1], [], []>} : vector<8x128xf32>, vector<128x128xf32>, vector<8x128xf32> -> vector<8x128xf32>
    %66 = arith.addf %63, %65 : vector<8x128xf32>
    %67 = math.tanh %66 : vector<8x128xf32>
    %68 = arith.mulf %62, %67 : vector<8x128xf32>
    %cst_27 = arith.constant 1.000000e+00 : f32
    %69 = vector.broadcast %cst_27 : f32 to vector<8x128xf32>
    %70 = arith.subf %69, %62 : vector<8x128xf32>
    %71 = arith.addf %68, %70 : vector<8x128xf32>
    %72 = arith.addf %71, %49 : vector<8x128xf32>
    %c3 = arith.constant 3 : index
    %c0_28 = arith.constant 0 : index
    %c0_29 = arith.constant 0 : index
    %73 = vector.load %arg1[%c3, %c0_28, %c0_29] : memref<4x8x64xf32, #tpu.memory_space<vmem>>, vector<1x8x64xf32>
    %74 = vector.shape_cast %73 : vector<1x8x64xf32> to vector<8x64xf32>
    %cst_30 = arith.constant dense<0.000000e+00> : vector<8x512xf32>
    %75 = tpu.matmul %74, %0, %cst_30 {dimension_numbers = #tpu.dot_dimension_numbers<[1], [0], [0], [1], [0, 0, 1, 1], [], []>} : vector<8x64xf32>, vector<64x512xf32>, vector<8x512xf32> -> vector<8x512xf32>
    %76 = vector.extract_strided_slice %75 {offsets = [0, 0], sizes = [8, 256], strides = [1, 1]} : vector<8x512xf32> to vector<8x256xf32>
    %cst_31 = arith.constant dense<0.000000e+00> : vector<8x256xf32>
    %77 = tpu.matmul %72, %1, %cst_31 {dimension_numbers = #tpu.dot_dimension_numbers<[1], [0], [0], [1], [0, 0, 1, 1], [], []>} : vector<8x128xf32>, vector<128x256xf32>, vector<8x256xf32> -> vector<8x256xf32>
    %78 = arith.addf %76, %77 : vector<8x256xf32>
    %79 = arith.negf %78 : vector<8x256xf32>
    %80 = math.exp %79 : vector<8x256xf32>
    %cst_32 = arith.constant 1.000000e+00 : f32
    %81 = vector.broadcast %cst_32 : f32 to vector<8x256xf32>
    %82 = arith.addf %81, %80 : vector<8x256xf32>
    %83 = arith.divf %81, %82 : vector<8x256xf32>
    %84 = vector.extract_strided_slice %83 {offsets = [0, 0], sizes = [8, 128], strides = [1, 1]} : vector<8x256xf32> to vector<8x128xf32>
    %85 = vector.extract_strided_slice %83 {offsets = [0, 128], sizes = [8, 128], strides = [1, 1]} : vector<8x256xf32> to vector<8x128xf32>
    %86 = vector.extract_strided_slice %75 {offsets = [0, 256], sizes = [8, 128], strides = [1, 1]} : vector<8x512xf32> to vector<8x128xf32>
    %87 = arith.mulf %72, %84 : vector<8x128xf32>
    %cst_33 = arith.constant dense<0.000000e+00> : vector<8x128xf32>
    %88 = tpu.matmul %87, %2, %cst_33 {dimension_numbers = #tpu.dot_dimension_numbers<[1], [0], [0], [1], [0, 0, 1, 1], [], []>} : vector<8x128xf32>, vector<128x128xf32>, vector<8x128xf32> -> vector<8x128xf32>
    %89 = arith.addf %86, %88 : vector<8x128xf32>
    %90 = math.tanh %89 : vector<8x128xf32>
    %91 = arith.mulf %85, %90 : vector<8x128xf32>
    %cst_34 = arith.constant 1.000000e+00 : f32
    %92 = vector.broadcast %cst_34 : f32 to vector<8x128xf32>
    %93 = arith.subf %92, %85 : vector<8x128xf32>
    %94 = arith.addf %91, %93 : vector<8x128xf32>
    %95 = arith.addf %94, %72 : vector<8x128xf32>
    %c0_35 = arith.constant 0 : index
    %c0_36 = arith.constant 0 : index
    %96 = vector.load %arg2[%c0_35, %c0_36] : memref<8x64xf32, #tpu.memory_space<vmem>>, vector<8x64xf32>
    %cst_37 = arith.constant dense<0.000000e+00> : vector<8x512xf32>
    %97 = tpu.matmul %96, %0, %cst_37 {dimension_numbers = #tpu.dot_dimension_numbers<[1], [0], [0], [1], [0, 0, 1, 1], [], []>} : vector<8x64xf32>, vector<64x512xf32>, vector<8x512xf32> -> vector<8x512xf32>
    %98 = vector.extract_strided_slice %97 {offsets = [0, 0], sizes = [8, 256], strides = [1, 1]} : vector<8x512xf32> to vector<8x256xf32>
    %cst_38 = arith.constant dense<0.000000e+00> : vector<8x256xf32>
    %99 = tpu.matmul %95, %1, %cst_38 {dimension_numbers = #tpu.dot_dimension_numbers<[1], [0], [0], [1], [0, 0, 1, 1], [], []>} : vector<8x128xf32>, vector<128x256xf32>, vector<8x256xf32> -> vector<8x256xf32>
    %100 = arith.addf %98, %99 : vector<8x256xf32>
    %101 = arith.negf %100 : vector<8x256xf32>
    %102 = math.exp %101 : vector<8x256xf32>
    %cst_39 = arith.constant 1.000000e+00 : f32
    %103 = vector.broadcast %cst_39 : f32 to vector<8x256xf32>
    %104 = arith.addf %103, %102 : vector<8x256xf32>
    %105 = arith.divf %103, %104 : vector<8x256xf32>
    %106 = vector.extract_strided_slice %105 {offsets = [0, 0], sizes = [8, 128], strides = [1, 1]} : vector<8x256xf32> to vector<8x128xf32>
    %107 = vector.extract_strided_slice %105 {offsets = [0, 128], sizes = [8, 128], strides = [1, 1]} : vector<8x256xf32> to vector<8x128xf32>
    %108 = vector.extract_strided_slice %97 {offsets = [0, 256], sizes = [8, 128], strides = [1, 1]} : vector<8x512xf32> to vector<8x128xf32>
    %109 = arith.mulf %95, %106 : vector<8x128xf32>
    %cst_40 = arith.constant dense<0.000000e+00> : vector<8x128xf32>
    %110 = tpu.matmul %109, %2, %cst_40 {dimension_numbers = #tpu.dot_dimension_numbers<[1], [0], [0], [1], [0, 0, 1, 1], [], []>} : vector<8x128xf32>, vector<128x128xf32>, vector<8x128xf32> -> vector<8x128xf32>
    %111 = arith.addf %108, %110 : vector<8x128xf32>
    %112 = math.tanh %111 : vector<8x128xf32>
    %113 = arith.mulf %107, %112 : vector<8x128xf32>
    %cst_41 = arith.constant 1.000000e+00 : f32
    %114 = vector.broadcast %cst_41 : f32 to vector<8x128xf32>
    %115 = arith.subf %114, %107 : vector<8x128xf32>
    %116 = arith.addf %113, %115 : vector<8x128xf32>
    %117 = arith.addf %116, %95 : vector<8x128xf32>
    %c0_42 = arith.constant 0 : index
    %c0_43 = arith.constant 0 : index
    %118 = vector.load %arg10[%c0_42, %c0_43] : memref<8x128xf32, #tpu.memory_space<vmem>>, vector<8x128xf32>
    tpu.vector_store %arg10[%c0_42, %c0_43], %117 {strides = array<i32>} : memref<8x128xf32, #tpu.memory_space<vmem>>, vector<8x128xf32>,
    %c0_44 = arith.constant 0 : index
    %c0_45 = arith.constant 0 : index
    %119 = vector.load %arg7[%c0_44, %c0_45] : memref<128x128xf32, #tpu.memory_space<vmem>>, vector<128x128xf32>
    %c0_46 = arith.constant 0 : index
    %c0_47 = arith.constant 0 : index
    %120 = vector.load %arg8[%c0_46, %c0_47] : memref<1x128xf32, #tpu.memory_space<vmem>>, vector<1x128xf32>
    %121 = vector.extract_strided_slice %97 {offsets = [0, 384], sizes = [8, 128], strides = [1, 1]} : vector<8x512xf32> to vector<8x128xf32>
    %cst_48 = arith.constant dense<0.000000e+00> : vector<8x128xf32>
    %122 = tpu.matmul %117, %119, %cst_48 {dimension_numbers = #tpu.dot_dimension_numbers<[1], [0], [0], [1], [0, 0, 1, 1], [], []>} : vector<8x128xf32>, vector<128x128xf32>, vector<8x128xf32> -> vector<8x128xf32>
    %123 = arith.addf %121, %122 : vector<8x128xf32>
    %124 = vector.broadcast %120 : vector<1x128xf32> to vector<8x128xf32>
    %125 = arith.addf %123, %124 : vector<8x128xf32>
    %cst_49 = arith.constant 0.000000e+00 : f32
    %126 = vector.broadcast %cst_49 : f32 to vector<8x128xf32>
    %127 = arith.maximumf %125, %126 : vector<8x128xf32>
    %128 = tpu.iota {dimensions = array<i32: 1>} : vector<8x128xi32>
    %c16_i32 = arith.constant 16 : i32
    %129 = vector.broadcast %c16_i32 : i32 to vector<8x128xi32>
    %130 = arith.cmpi slt, %128, %129 : vector<8x128xi32>
    %cst_50 = arith.constant -1.000000e+30 : f32
    %131 = vector.broadcast %cst_50 : f32 to vector<8x128xf32>
    %132 = arith.select %130, %127, %131 : vector<8x128xi1>, vector<8x128xf32>
    %cst_51 = arith.constant dense<0xFF800000> : vector<8xf32>
    %133 = vector.multi_reduction <maximumf>, %132, %cst_51 [1] : vector<8x128xf32> to vector<8xf32>
    %134 = vector.shape_cast %133 : vector<8xf32> to vector<8x1xf32>
    %135 = vector.broadcast %134 : vector<8x1xf32> to vector<8x128xf32>
    %136 = arith.subf %132, %135 : vector<8x128xf32>
    %137 = math.exp %136 : vector<8x128xf32>
    %cst_52 = arith.constant dense<0.000000e+00> : vector<8xf32>
    %138 = vector.multi_reduction <add>, %137, %cst_52 [1] : vector<8x128xf32> to vector<8xf32>
    %139 = vector.shape_cast %138 : vector<8xf32> to vector<8x1xf32>
    %140 = vector.broadcast %139 : vector<8x1xf32> to vector<8x128xf32>
    %141 = arith.divf %137, %140 : vector<8x128xf32>
    %c0_53 = arith.constant 0 : index
    %c0_54 = arith.constant 0 : index
    %142 = vector.load %arg9[%c0_53, %c0_54] : memref<8x128xf32, #tpu.memory_space<vmem>>, vector<8x128xf32>
    tpu.vector_store %arg9[%c0_53, %c0_54], %141 {strides = array<i32>} : memref<8x128xf32, #tpu.memory_space<vmem>>, vector<8x128xf32>,
    return
  }
  func.func @transform_0(%arg0: i32) -> (i32, i32, i32) {
    %c0_i32 = arith.constant 0 : i32
    %c0_i32_0 = arith.constant 0 : i32
    %c0_i32_1 = arith.constant 0 : i32
    return %c0_i32, %arg0, %c0_i32_0 : i32, i32, i32
  }
  func.func @transform_1(%arg0: i32) -> (i32, i32) {
    %c0_i32 = arith.constant 0 : i32
    %c0_i32_0 = arith.constant 0 : i32
    return %arg0, %c0_i32 : i32, i32
  }
  func.func @transform_2(%arg0: i32) -> (i32, i32) {
    %c0_i32 = arith.constant 0 : i32
    %c0_i32_0 = arith.constant 0 : i32
    return %arg0, %c0_i32 : i32, i32
  }
  func.func @transform_3(%arg0: i32) -> (i32, i32) {
    %c0_i32 = arith.constant 0 : i32
    %c0_i32_0 = arith.constant 0 : i32
    %c0_i32_1 = arith.constant 0 : i32
    return %c0_i32, %c0_i32_0 : i32, i32
  }
  func.func @transform_4(%arg0: i32) -> (i32, i32) {
    %c0_i32 = arith.constant 0 : i32
    %c0_i32_0 = arith.constant 0 : i32
    %c0_i32_1 = arith.constant 0 : i32
    return %c0_i32, %c0_i32_0 : i32, i32
  }
  func.func @transform_5(%arg0: i32) -> (i32, i32) {
    %c0_i32 = arith.constant 0 : i32
    %c0_i32_0 = arith.constant 0 : i32
    %c0_i32_1 = arith.constant 0 : i32
    return %c0_i32, %c0_i32_0 : i32, i32
  }
  func.func @transform_6(%arg0: i32) -> (i32, i32) {
    %c0_i32 = arith.constant 0 : i32
    %c0_i32_0 = arith.constant 0 : i32
    %c0_i32_1 = arith.constant 0 : i32
    return %c0_i32, %c0_i32_0 : i32, i32
  }
  func.func @transform_7(%arg0: i32) -> (i32, i32) {
    %c0_i32 = arith.constant 0 : i32
    %c0_i32_0 = arith.constant 0 : i32
    %c0_i32_1 = arith.constant 0 : i32
    return %c0_i32, %c0_i32_0 : i32, i32
  }
  func.func @transform_8(%arg0: i32) -> (i32, i32) {
    %c0_i32 = arith.constant 0 : i32
    %c0_i32_0 = arith.constant 0 : i32
    return %arg0, %c0_i32 : i32, i32
  }
  func.func @transform_9(%arg0: i32) -> (i32, i32) {
    %c0_i32 = arith.constant 0 : i32
    %c0_i32_0 = arith.constant 0 : i32
    return %arg0, %c0_i32 : i32, i32
  }
}

</mosaic_0001>

<llo_original>
// kernel: _forward_batched.1
$region0: #{_forward_batched.1}
  #allocation0 [shape = 'u32[]', space=smem, size = 0x4, offset = 0x4, fixed_abs, tag = 'smem constant byte address 0x4 - core index']
  #allocation1 [shape = 'u32[144,128]{1,0:T(1,128)}', space=vmem, size = 0x12000, scoped, tag = 'internal scratch']
  %s0 = inlined_call_operand.vmem [shape: f32[4,8,64], index: 0, kind: input, shape index: {}]
  %s1 = inlined_call_operand.vmem [shape: f32[8,64], index: 1, kind: input, shape index: {}]
  %s2 = inlined_call_operand.vmem [shape: f32[8,128], index: 2, kind: input, shape index: {}]
  %s3 = inlined_call_operand.hbm [shape: f32[64,512], index: 3, kind: input, shape index: {}]
  %s4 = inlined_call_operand.hbm [shape: f32[128,256], index: 4, kind: input, shape index: {}]
  %s5 = inlined_call_operand.hbm [shape: f32[128,128], index: 5, kind: input, shape index: {}]
  %s6 = inlined_call_operand.hbm [shape: f32[128,128], index: 6, kind: input, shape index: {}]
  %s7 = inlined_call_operand.vmem [shape: f32[1,128], index: 7, kind: input, shape index: {}]
  %s8 = inlined_call_operand.hbm [shape: f32[8,128], index: 8, kind: output, shape index: {0}]
  %s9 = inlined_call_operand.hbm [shape: f32[8,128], index: 9, kind: output, shape index: {1}]
  %10 = xla_tuple %s8, %s9
  %s11 = sld [smem:[#allocation0]]
  $region66: #{_forward_batched.1} parent=0
    _
  %s13 = ssub.s32 1, %s11
  %s14 = scalar_select 0, %s13, %s11
  $region1: #{_forward_batched.1} parent=0
    #allocation2 [shape = 'u8[131072]{0}', space=vmem, size = 0x20000, scoped, tag = 'input window, operand 3, single buffered']
    #allocation3 [shape = 's32[1]{0}', space=sflag, size = 0x4, scoped, tag = 'scoped memory for _forward_batched.1']
    #allocation4 [shape = 's32[1]{0}', space=sflag, size = 0x4, scoped, tag = 'scoped memory for _forward_batched.1']
    #allocation5 [shape = 'u8[131072]{0}', space=vmem, size = 0x20000, scoped, tag = 'input window, operand 4, single buffered']
    #allocation6 [shape = 's32[1]{0}', space=sflag, size = 0x4, scoped, tag = 'scoped memory for _forward_batched.1']
    #allocation7 [shape = 'u8[65536]{0}', space=vmem, size = 0x10000, scoped, tag = 'input window, operand 5, single buffered']
    #allocation8 [shape = 'u8[65536]{0}', space=vmem, size = 0x10000, scoped, tag = 'input window, operand 6, single buffered']
    #allocation9 [shape = 's32[1]{0}', space=sflag, size = 0x4, scoped, tag = 'scoped memory for _forward_batched.1']
    #allocation10 [shape = 'u8[4096]{0}', space=vmem, size = 0x1000, scoped, tag = 'output window, operand 0, single buffered']
    #allocation11 [shape = 'u8[4096]{0}', space=vmem, size = 0x1000, scoped, tag = 'output window, operand 1, single buffered']
    #allocation12 [shape = 's32[1]{0}', space=sflag, size = 0x4, scoped, tag = 'scoped memory for _forward_batched.1']
    %15 = vsyncpa [#allocation3], 0
    %16 = vsyncpa [#allocation6], 0
    %17 = vsyncpa [#allocation9], 0
    %18 = vsyncpa [#allocation4], 0
    %19 = vsyncpa [#allocation12], 0
    // Predicated region
    $region2: #{_forward_batched.1} parent=1 // pred_check
      _
    $region3: #{_forward_batched.1} parent=1 // pred_check_branch
      %21 = sbr.rel (0) target = $region5
    $region4: #{_forward_batched.1} parent=1 // pred_region
      _
    $region5: #{_forward_batched.1} parent=1 // pred_fallthru
      _
    // Predicated region
    $region6: #{_forward_batched.1} parent=1 // pred_check
      _
    $region7: #{_forward_batched.1} parent=1 // pred_check_branch
      %23 = sbr.rel (0) target = $region9
    $region8: #{_forward_batched.1} parent=1 // pred_region
      _
    $region9: #{_forward_batched.1} parent=1 // pred_fallthru
      _
    // Predicated region
    $region10: #{_forward_batched.1} parent=1 // pred_check
      _
    $region11: #{_forward_batched.1} parent=1 // pred_check_branch
      %25 = sbr.rel (0) target = $region13
    $region12: #{_forward_batched.1} parent=1 // pred_region
      _
    $region13: #{_forward_batched.1} parent=1 // pred_fallthru
      _
    // Predicated region
    $region14: #{_forward_batched.1} parent=1 // pred_check
      _
    $region15: #{_forward_batched.1} parent=1 // pred_check_branch
      %27 = sbr.rel (0) target = $region17
    $region16: #{_forward_batched.1} parent=1 // pred_region
      %s29 = ssub.s32 4096, 4096
      %30 = vsyncadd [#allocation3], %s29
      %s31 = sshll.u32 [#allocation2], 4
      %s32 = int_to_ptr.vmem [resolvable:$true] %s31
      %37 = dma.hbm_to_vmem [thread:$0]  %s3, 4096, %s32, [#allocation3], 512, 512, 32
    $region17: #{_forward_batched.1} parent=1 // pred_fallthru
      _
    // Predicated region
    $region18: #{_forward_batched.1} parent=1 // pred_check
      _
    $region19: #{_forward_batched.1} parent=1 // pred_check_branch
      %39 = sbr.rel (0) target = $region21
    $region20: #{_forward_batched.1} parent=1 // pred_region
      %s41 = ssub.s32 4096, 4096
      %42 = vsyncadd [#allocation6], %s41
      %s43 = sshll.u32 [#allocation5], 4
      %s44 = int_to_ptr.vmem [resolvable:$true] %s43
      %49 = dma.hbm_to_vmem [thread:$0]  %s4, 4096, %s44, [#allocation6], 256, 256, 16
    $region21: #{_forward_batched.1} parent=1 // pred_fallthru
      _
    // Predicated region
    $region22: #{_forward_batched.1} parent=1 // pred_check
      _
    $region23: #{_forward_batched.1} parent=1 // pred_check_branch
      %51 = sbr.rel (0) target = $region25
    $region24: #{_forward_batched.1} parent=1 // pred_region
      %s53 = ssub.s32 2048, 2048
      %54 = vsyncadd [#allocation6], %s53
      %s55 = sshll.u32 [#allocation7], 4
      %s56 = int_to_ptr.vmem [resolvable:$true] %s55
      %61 = dma.hbm_to_vmem [thread:$0]  %s5, 2048, %s56, [#allocation6], 128, 128, 8
    $region25: #{_forward_batched.1} parent=1 // pred_fallthru
      _
    // Predicated region
    $region26: #{_forward_batched.1} parent=1 // pred_check
      _
    $region27: #{_forward_batched.1} parent=1 // pred_check_branch
      %63 = sbr.rel (0) target = $region29
    $region28: #{_forward_batched.1} parent=1 // pred_region
      %s65 = ssub.s32 2048, 2048
      %66 = vsyncadd [#allocation9], %s65
      %s67 = sshll.u32 [#allocation8], 4
      %s68 = int_to_ptr.vmem [resolvable:$true] %s67
      %73 = dma.hbm_to_vmem [thread:$0]  %s6, 2048, %s68, [#allocation9], 128, 128, 8
    $region29: #{_forward_batched.1} parent=1 // pred_fallthru
      _
    // Predicated region
    $region30: #{_forward_batched.1} parent=1 // pred_check
      _
    $region31: #{_forward_batched.1} parent=1 // pred_check_branch
      %75 = sbr.rel (0) target = $region33
    $region32: #{_forward_batched.1} parent=1 // pred_region
      _
    $region33: #{_forward_batched.1} parent=1 // pred_fallthru
      _
    // Predicated region
    $region34: #{_forward_batched.1} parent=1 // pred_check
      _
    $region35: #{_forward_batched.1} parent=1 // pred_check_branch
      %77 = sbr.rel (0) target = $region37
    $region36: #{_forward_batched.1} parent=1 // pred_region
      %78 = dma.done [#allocation3], 4096
    $region37: #{_forward_batched.1} parent=1 // pred_fallthru
      _
    // Predicated region
    $region38: #{_forward_batched.1} parent=1 // pred_check
      _
    $region39: #{_forward_batched.1} parent=1 // pred_check_branch
      %80 = sbr.rel (0) target = $region41
    $region40: #{_forward_batched.1} parent=1 // pred_region
      %81 = dma.done [#allocation6], 4096
    $region41: #{_forward_batched.1} parent=1 // pred_fallthru
      _
    // Predicated region
    $region42: #{_forward_batched.1} parent=1 // pred_check
      _
    $region43: #{_forward_batched.1} parent=1 // pred_check_branch
      %83 = sbr.rel (0) target = $region45
    $region44: #{_forward_batched.1} parent=1 // pred_region
      %84 = dma.done [#allocation6], 2048
    $region45: #{_forward_batched.1} parent=1 // pred_fallthru
      _
    // Predicated region
    $region46: #{_forward_batched.1} parent=1 // pred_check
      _
    $region47: #{_forward_batched.1} parent=1 // pred_check_branch
      %86 = sbr.rel (0) target = $region49
    $region48: #{_forward_batched.1} parent=1 // pred_region
      %87 = dma.done [#allocation9], 2048
    $region49: #{_forward_batched.1} parent=1 // pred_fallthru
      _
    %v88 = vld [vmem:[#allocation2] sm:$0xff]
    %v89 = vld [vmem:[#allocation2 + $0x8] sm:$0xff]
    %v90 = vld [vmem:[#allocation2 + $0x10] sm:$0xff]
    %v91 = vld [vmem:[#allocation2 + $0x18] sm:$0xff]
    %v92 = vld [vmem:[#allocation2 + $0x20] sm:$0xff]
    %v93 = vld [vmem:[#allocation2 + $0x28] sm:$0xff]
    %v94 = vld [vmem:[#allocation2 + $0x30] sm:$0xff]
    %v95 = vld [vmem:[#allocation2 + $0x38] sm:$0xff]
    %v96 = vld [vmem:[#allocation2 + $0x40] sm:$0xff]
    %v97 = vld [vmem:[#allocation2 + $0x48] sm:$0xff]
    %v98 = vld [vmem:[#allocation2 + $0x50] sm:$0xff]
    %v99 = vld [vmem:[#allocation2 + $0x58] sm:$0xff]
    %v100 = vld [vmem:[#allocation2 + $0x60] sm:$0xff]
    %v101 = vld [vmem:[#allocation2 + $0x68] sm:$0xff]
    %v102 = vld [vmem:[#allocation2 + $0x70] sm:$0xff]
    %v103 = vld [vmem:[#allocation2 + $0x78] sm:$0xff]
    %v104 = vld [vmem:[#allocation2 + $0x80] sm:$0xff]
    %v105 = vld [vmem:[#allocation2 + $0x88] sm:$0xff]
    %v106 = vld [vmem:[#allocation2 + $0x90] sm:$0xff]
    %v107 = vld [vmem:[#allocation2 + $0x98] sm:$0xff]
    %v108 = vld [vmem:[#allocation2 + $0xa0] sm:$0xff]
    %v109 = vld [vmem:[#allocation2 + $0xa8] sm:$0xff]
    %v110 = vld [vmem:[#allocation2 + $0xb0] sm:$0xff]
    %v111 = vld [vmem:[#allocation2 + $0xb8] sm:$0xff]
    %v112 = vld [vmem:[#allocation2 + $0xc0] sm:$0xff]
    %v113 = vld [vmem:[#allocation2 + $0xc8] sm:$0xff]
    %v114 = vld [vmem:[#allocation2 + $0xd0] sm:$0xff]
    %v115 = vld [vmem:[#allocation2 + $0xd8] sm:$0xff]
    %v116 = vld [vmem:[#allocation2 + $0xe0] sm:$0xff]
    %v117 = vld [vmem:[#allocation2 + $0xe8] sm:$0xff]
    %v118 = vld [vmem:[#allocation2 + $0xf0] sm:$0xff]
    %v119 = vld [vmem:[#allocation2 + $0xf8] sm:$0xff]
    %v120 = vld [vmem:[#allocation5] sm:$0xff]
    %v121 = vld [vmem:[#allocation5 + $0x8] sm:$0xff]
    %v122 = vld [vmem:[#allocation5 + $0x10] sm:$0xff]
    %v123 = vld [vmem:[#allocation5 + $0x18] sm:$0xff]
    %v124 = vld [vmem:[#allocation5 + $0x20] sm:$0xff]
    %v125 = vld [vmem:[#allocation5 + $0x28] sm:$0xff]
    %v126 = vld [vmem:[#allocation5 + $0x30] sm:$0xff]
    %v127 = vld [vmem:[#allocation5 + $0x38] sm:$0xff]
    %v128 = vld [vmem:[#allocation5 + $0x40] sm:$0xff]
    %v129 = vld [vmem:[#allocation5 + $0x48] sm:$0xff]
    %v130 = vld [vmem:[#allocation5 + $0x50] sm:$0xff]
    %v131 = vld [vmem:[#allocation5 + $0x58] sm:$0xff]
    %v132 = vld [vmem:[#allocation5 + $0x60] sm:$0xff]
    %v133 = vld [vmem:[#allocation5 + $0x68] sm:$0xff]
    %v134 = vld [vmem:[#allocation5 + $0x70] sm:$0xff]
    %v135 = vld [vmem:[#allocation5 + $0x78] sm:$0xff]
    %v136 = vld [vmem:[#allocation5 + $0x80] sm:$0xff]
    %v137 = vld [vmem:[#allocation5 + $0x88] sm:$0xff]
    %v138 = vld [vmem:[#allocation5 + $0x90] sm:$0xff]
    %v139 = vld [vmem:[#allocation5 + $0x98] sm:$0xff]
    %v140 = vld [vmem:[#allocation5 + $0xa0] sm:$0xff]
    %v141 = vld [vmem:[#allocation5 + $0xa8] sm:$0xff]
    %v142 = vld [vmem:[#allocation5 + $0xb0] sm:$0xff]
    %v143 = vld [vmem:[#allocation5 + $0xb8] sm:$0xff]
    %v144 = vld [vmem:[#allocation5 + $0xc0] sm:$0xff]
    %v145 = vld [vmem:[#allocation5 + $0xc8] sm:$0xff]
    %v146 = vld [vmem:[#allocation5 + $0xd0] sm:$0xff]
    %v147 = vld [vmem:[#allocation5 + $0xd8] sm:$0xff]
    %v148 = vld [vmem:[#allocation5 + $0xe0] sm:$0xff]
    %v149 = vld [vmem:[#allocation5 + $0xe8] sm:$0xff]
    %v150 = vld [vmem:[#allocation5 + $0xf0] sm:$0xff]
    %v151 = vld [vmem:[#allocation5 + $0xf8] sm:$0xff]
    %v152 = vld [vmem:[#allocation7] sm:$0xff]
    %v153 = vld [vmem:[#allocation7 + $0x8] sm:$0xff]
    %v154 = vld [vmem:[#allocation7 + $0x10] sm:$0xff]
    %v155 = vld [vmem:[#allocation7 + $0x18] sm:$0xff]
    %v156 = vld [vmem:[#allocation7 + $0x20] sm:$0xff]
    %v157 = vld [vmem:[#allocation7 + $0x28] sm:$0xff]
    %v158 = vld [vmem:[#allocation7 + $0x30] sm:$0xff]
    %v159 = vld [vmem:[#allocation7 + $0x38] sm:$0xff]
    %v160 = vld [vmem:[#allocation7 + $0x40] sm:$0xff]
    %v161 = vld [vmem:[#allocation7 + $0x48] sm:$0xff]
    %v162 = vld [vmem:[#allocation7 + $0x50] sm:$0xff]
    %v163 = vld [vmem:[#allocation7 + $0x58] sm:$0xff]
    %v164 = vld [vmem:[#allocation7 + $0x60] sm:$0xff]
    %v165 = vld [vmem:[#allocation7 + $0x68] sm:$0xff]
    %v166 = vld [vmem:[#allocation7 + $0x70] sm:$0xff]
    %v167 = vld [vmem:[#allocation7 + $0x78] sm:$0xff]
    %v168 = vld [vmem:[%s2] sm:$0xff]
    %v169 = vld [vmem:[%s0] sm:$0xff]
    %vm170 = vcmask 523264
    %v172 = vsel %vm170, %v169, 0
    %174 = vmatprep.subr.mxu0 %v89
    %175 = vmatpush1.msra.mxu0 %v88
    %176 = vmatprep.subr.mxu0 %v93
    %177 = vmatpush1.msra.mxu0 %v92
    %178 = vmatprep.subr.mxu0 %v97
    %179 = vmatpush1.msra.mxu0 %v96
    %180 = vmatprep.subr.mxu0 %v101
    %181 = vmatpush1.msra.mxu0 %v100
    %182 = vmatprep.subr.mxu0 %v105
    %183 = vmatpush1.msra.mxu0 %v104
    %184 = vmatprep.subr.mxu0 %v109
    %185 = vmatpush1.msra.mxu0 %v108
    %186 = vmatprep.subr.mxu0 %v113
    %187 = vmatpush1.msra.mxu0 %v112
    %188 = vmatprep.subr.mxu0 %v117
    %189 = vmatpush1.msra.mxu0 %v116
    %190 = vmatprep.subr.mxu0 0.0
    %191 = vmatpush1.msra.mxu0 0.0
    %192 = vmatprep.subr.mxu0 0.0
    %193 = vmatpush1.msra.mxu0 0.0
    %194 = vmatprep.subr.mxu0 0.0
    %195 = vmatpush1.msra.mxu0 0.0
    %196 = vmatprep.subr.mxu0 0.0
    %197 = vmatpush1.msra.mxu0 0.0
    %198 = vmatprep.subr.mxu0 0.0
    %199 = vmatpush1.msra.mxu0 0.0
    %200 = vmatprep.subr.mxu0 0.0
    %201 = vmatpush1.msra.mxu0 0.0
    %202 = vmatprep.subr.mxu0 0.0
    %203 = vmatpush1.msra.mxu0 0.0
    %204 = vmatprep.subr.mxu0 0.0
    %205 = vmatpush1.msra.mxu0 0.0
    %206 = vmatprep.subr.mxu0 0.0
    %207 = vmatpush1.msra.mxu0 0.0
    %208 = vmatprep.subr.mxu0 0.0
    %209 = vmatpush1.msra.mxu0 0.0
    %210 = vmatprep.subr.mxu0 0.0
    %211 = vmatpush1.msra.mxu0 0.0
    %212 = vmatprep.subr.mxu0 0.0
    %213 = vmatpush1.msra.mxu0 0.0
    %214 = vmatprep.subr.mxu0 0.0
    %215 = vmatpush1.msra.mxu0 0.0
    %216 = vmatprep.subr.mxu0 0.0
    %217 = vmatpush1.msra.mxu0 0.0
    %218 = vmatprep.subr.mxu0 0.0
    %219 = vmatpush1.msra.mxu0 0.0
    %220 = vmatprep.subr.mxu0 0.0
    %221 = vmatpush1.msra.mxu0 0.0
    %222 = vmatprep.subr.mxu0 0.0
    %223 = vmatpush1.msra.mxu0 0.0
    %224 = vmatprep.subr.mxu0 0.0
    %225 = vmatpush1.msra.mxu0 0.0
    %226 = vmatprep.subr.mxu0 0.0
    %227 = vmatpush1.msra.mxu0 0.0
    %228 = vmatprep.subr.mxu0 0.0
    %229 = vmatpush1.msra.mxu0 0.0
    %230 = vmatprep.subr.mxu0 0.0
    %231 = vmatpush1.msra.mxu0 0.0
    %232 = vmatprep.subr.mxu0 0.0
    %233 = vmatpush1.msra.mxu0 0.0
    %234 = vmatprep.subr.mxu0 0.0
    %235 = vmatpush1.msra.mxu0 0.0
    %236 = vmatprep.subr.mxu0 0.0
    %237 = vmatpush1.msra.mxu0 0.0
    %238 = vmatprep.mubr.f32.mxu0 0.0
    %239 = vmatmul.mubr.f32.gmra.mrb[0].mxu0 %v172
    %v240 = vpop.f32.mrb[0].mxu0
    %v241 = vadd.f32 0.0, %v240
    %v242 = vpop.f32.mrb[0].mxu0
    %v243 = vadd.f32 0.0, %v242
    %244 = vdwg.mxu0
    %245 = vmatprep.subr.mxu0 %v91
    %246 = vmatpush1.msra.mxu0 %v90
    %247 = vmatprep.subr.mxu0 %v95
    %248 = vmatpush1.msra.mxu0 %v94
    %249 = vmatprep.subr.mxu0 %v99
    %250 = vmatpush1.msra.mxu0 %v98
    %251 = vmatprep.subr.mxu0 %v103
    %252 = vmatpush1.msra.mxu0 %v102
    %253 = vmatprep.subr.mxu0 %v107
    %254 = vmatpush1.msra.mxu0 %v106
    %255 = vmatprep.subr.mxu0 %v111
    %256 = vmatpush1.msra.mxu0 %v110
    %257 = vmatprep.subr.mxu0 %v115
    %258 = vmatpush1.msra.mxu0 %v114
    %259 = vmatprep.subr.mxu0 %v119
    %260 = vmatpush1.msra.mxu0 %v118
    %261 = vmatprep.subr.mxu0 0.0
    %262 = vmatpush1.msra.mxu0 0.0
    %263 = vmatprep.subr.mxu0 0.0
    %264 = vmatpush1.msra.mxu0 0.0
    %265 = vmatprep.subr.mxu0 0.0
    %266 = vmatpush1.msra.mxu0 0.0
    %267 = vmatprep.subr.mxu0 0.0
    %268 = vmatpush1.msra.mxu0 0.0
    %269 = vmatprep.subr.mxu0 0.0
    %270 = vmatpush1.msra.mxu0 0.0
    %271 = vmatprep.subr.mxu0 0.0
    %272 = vmatpush1.msra.mxu0 0.0
    %273 = vmatprep.subr.mxu0 0.0
    %274 = vmatpush1.msra.mxu0 0.0
    %275 = vmatprep.subr.mxu0 0.0
    %276 = vmatpush1.msra.mxu0 0.0
    %277 = vmatprep.subr.mxu0 0.0
    %278 = vmatpush1.msra.mxu0 0.0
    %279 = vmatprep.subr.mxu0 0.0
    %280 = vmatpush1.msra.mxu0 0.0
    %281 = vmatprep.subr.mxu0 0.0
    %282 = vmatpush1.msra.mxu0 0.0
    %283 = vmatprep.subr.mxu0 0.0
    %284 = vmatpush1.msra.mxu0 0.0
    %285 = vmatprep.subr.mxu0 0.0
    %286 = vmatpush1.msra.mxu0 0.0
    %287 = vmatprep.subr.mxu0 0.0
    %288 = vmatpush1.msra.mxu0 0.0
    %289 = vmatprep.subr.mxu0 0.0
    %290 = vmatpush1.msra.mxu0 0.0
    %291 = vmatprep.subr.mxu0 0.0
    %292 = vmatpush1.msra.mxu0 0.0
    %293 = vmatprep.subr.mxu0 0.0
    %294 = vmatpush1.msra.mxu0 0.0
    %295 = vmatprep.subr.mxu0 0.0
    %296 = vmatpush1.msra.mxu0 0.0
    %297 = vmatprep.subr.mxu0 0.0
    %298 = vmatpush1.msra.mxu0 0.0
    %299 = vmatprep.subr.mxu0 0.0
    %300 = vmatpush1.msra.mxu0 0.0
    %301 = vmatprep.subr.mxu0 0.0
    %302 = vmatpush1.msra.mxu0 0.0
    %303 = vmatprep.subr.mxu0 0.0
    %304 = vmatpush1.msra.mxu0 0.0
    %305 = vmatprep.subr.mxu0 0.0
    %306 = vmatpush1.msra.mxu0 0.0
    %307 = vmatprep.subr.mxu0 0.0
    %308 = vmatpush1.msra.mxu0 0.0
    %309 = vmatprep.mubr.f32.mxu0 0.0
    %310 = vmatmul.mubr.f32.gmra.mrb[0].mxu0 %v172
    %v311 = vpop.f32.mrb[0].mxu0
    %v312 = vadd.f32 0.0, %v311
    %v313 = vpop.f32.mrb[0].mxu0
    %314 = vdwg.mxu0
    %315 = vmatprep.subr.mxu0 %v121
    %316 = vmatpush1.msra.mxu0 %v120
    %317 = vmatprep.subr.mxu0 %v123
    %318 = vmatpush1.msra.mxu0 %v122
    %319 = vmatprep.subr.mxu0 %v125
    %320 = vmatpush1.msra.mxu0 %v124
    %321 = vmatprep.subr.mxu0 %v127
    %322 = vmatpush1.msra.mxu0 %v126
    %323 = vmatprep.subr.mxu0 %v129
    %324 = vmatpush1.msra.mxu0 %v128
    %325 = vmatprep.subr.mxu0 %v131
    %326 = vmatpush1.msra.mxu0 %v130
    %327 = vmatprep.subr.mxu0 %v133
    %328 = vmatpush1.msra.mxu0 %v132
    %329 = vmatprep.subr.mxu0 %v135
    %330 = vmatpush1.msra.mxu0 %v134
    %331 = vmatprep.subr.mxu0 %v137
    %332 = vmatpush1.msra.mxu0 %v136
    %333 = vmatprep.subr.mxu0 %v139
    %334 = vmatpush1.msra.mxu0 %v138
    %335 = vmatprep.subr.mxu0 %v141
    %336 = vmatpush1.msra.mxu0 %v140
    %337 = vmatprep.subr.mxu0 %v143
    %338 = vmatpush1.msra.mxu0 %v142
    %339 = vmatprep.subr.mxu0 %v145
    %340 = vmatpush1.msra.mxu0 %v144
    %341 = vmatprep.subr.mxu0 %v147
    %342 = vmatpush1.msra.mxu0 %v146
    %343 = vmatprep.subr.mxu0 %v149
    %344 = vmatpush1.msra.mxu0 %v148
    %345 = vmatprep.subr.mxu0 %v151
    %346 = vmatpush1.msra.mxu0 %v150
    %347 = vmatprep.subr.mxu0 0.0
    %348 = vmatpush1.msra.mxu0 0.0
    %349 = vmatprep.subr.mxu0 0.0
    %350 = vmatpush1.msra.mxu0 0.0
    %351 = vmatprep.subr.mxu0 0.0
    %352 = vmatpush1.msra.mxu0 0.0
    %353 = vmatprep.subr.mxu0 0.0
    %354 = vmatpush1.msra.mxu0 0.0
    %355 = vmatprep.subr.mxu0 0.0
    %356 = vmatpush1.msra.mxu0 0.0
    %357 = vmatprep.subr.mxu0 0.0
    %358 = vmatpush1.msra.mxu0 0.0
    %359 = vmatprep.subr.mxu0 0.0
    %360 = vmatpush1.msra.mxu0 0.0
    %361 = vmatprep.subr.mxu0 0.0
    %362 = vmatpush1.msra.mxu0 0.0
    %363 = vmatprep.subr.mxu0 0.0
    %364 = vmatpush1.msra.mxu0 0.0
    %365 = vmatprep.subr.mxu0 0.0
    %366 = vmatpush1.msra.mxu0 0.0
    %367 = vmatprep.subr.mxu0 0.0
    %368 = vmatpush1.msra.mxu0 0.0
    %369 = vmatprep.subr.mxu0 0.0
    %370 = vmatpush1.msra.mxu0 0.0
    %371 = vmatprep.subr.mxu0 0.0
    %372 = vmatpush1.msra.mxu0 0.0
    %373 = vmatprep.subr.mxu0 0.0
    %374 = vmatpush1.msra.mxu0 0.0
    %375 = vmatprep.subr.mxu0 0.0
    %376 = vmatpush1.msra.mxu0 0.0
    %377 = vmatprep.subr.mxu0 0.0
    %378 = vmatpush1.msra.mxu0 0.0
    %379 = vmatprep.mubr.f32.mxu0 0.0
    %380 = vmatmul.mubr.f32.gmra.mrb[0].mxu0 %v168
    %v381 = vpop.f32.mrb[0].mxu0
    %v382 = vadd.f32 0.0, %v381
    %v383 = vpop.f32.mrb[0].mxu0
    %v384 = vadd.f32 0.0, %v383
    %385 = vdwg.mxu0
    %v386 = vadd.f32 %v241, %v382
    %v387 = vadd.f32 %v243, %v384
    %v388 = vxor.u32 %v386, 2147483648
    %v389 = vxor.u32 %v387, 2147483648
    %v390 = vmul.f32 %v388, 1.442695
    %v391 = vpow.pop %v390
    %v392 = vmul.f32 %v389, 1.442695
    %v393 = vpow.pop %v392
    %v394 = vadd.f32 %v391, 1.0
    %v395 = vadd.f32 %v393, 1.0
    %v396 = vrcp.pop %v394
    %v397 = vmul.f32 1.0, %v396
    %v398 = vrcp.pop %v395
    %v399 = vmul.f32 1.0, %v398
    %v400 = vmul.f32 %v168, %v397
    %401 = vmatprep.subr.mxu0 0.0
    %402 = vmatpush1.msra.mxu0 %v152
    %403 = vmatprep.subr.mxu0 0.0
    %404 = vmatpush1.msra.mxu0 %v153
    %405 = vmatprep.subr.mxu0 0.0
    %406 = vmatpush1.msra.mxu0 %v154
    %407 = vmatprep.subr.mxu0 0.0
    %408 = vmatpush1.msra.mxu0 %v155
    %409 = vmatprep.subr.mxu0 0.0
    %410 = vmatpush1.msra.mxu0 %v156
    %411 = vmatprep.subr.mxu0 0.0
    %412 = vmatpush1.msra.mxu0 %v157
    %413 = vmatprep.subr.mxu0 0.0
    %414 = vmatpush1.msra.mxu0 %v158
    %415 = vmatprep.subr.mxu0 0.0
    %416 = vmatpush1.msra.mxu0 %v159
    %417 = vmatprep.subr.mxu0 0.0
    %418 = vmatpush1.msra.mxu0 %v160
    %419 = vmatprep.subr.mxu0 0.0
    %420 = vmatpush1.msra.mxu0 %v161
    %421 = vmatprep.subr.mxu0 0.0
    %422 = vmatpush1.msra.mxu0 %v162
    %423 = vmatprep.subr.mxu0 0.0
    %424 = vmatpush1.msra.mxu0 %v163
    %425 = vmatprep.subr.mxu0 0.0
    %426 = vmatpush1.msra.mxu0 %v164
    %427 = vmatprep.subr.mxu0 0.0
    %428 = vmatpush1.msra.mxu0 %v165
    %429 = vmatprep.subr.mxu0 0.0
    %430 = vmatpush1.msra.mxu0 %v166
    %431 = vmatprep.subr.mxu0 0.0
    %432 = vmatpush1.msra.mxu0 %v167
    %433 = vmatprep.subr.mxu0 0.0
    %434 = vmatpush1.msra.mxu0 0.0
    %435 = vmatprep.subr.mxu0 0.0
    %436 = vmatpush1.msra.mxu0 0.0
    %437 = vmatprep.subr.mxu0 0.0
    %438 = vmatpush1.msra.mxu0 0.0
    %439 = vmatprep.subr.mxu0 0.0
    %440 = vmatpush1.msra.mxu0 0.0
    %441 = vmatprep.subr.mxu0 0.0
    %442 = vmatpush1.msra.mxu0 0.0
    %443 = vmatprep.subr.mxu0 0.0
    %444 = vmatpush1.msra.mxu0 0.0
    %445 = vmatprep.subr.mxu0 0.0
    %446 = vmatpush1.msra.mxu0 0.0
    %447 = vmatprep.subr.mxu0 0.0
    %448 = vmatpush1.msra.mxu0 0.0
    %449 = vmatprep.subr.mxu0 0.0
    %450 = vmatpush1.msra.mxu0 0.0
    %451 = vmatprep.subr.mxu0 0.0
    %452 = vmatpush1.msra.mxu0 0.0
    %453 = vmatprep.subr.mxu0 0.0
    %454 = vmatpush1.msra.mxu0 0.0
    %455 = vmatprep.subr.mxu0 0.0
    %456 = vmatpush1.msra.mxu0 0.0
    %457 = vmatprep.subr.mxu0 0.0
    %458 = vmatpush1.msra.mxu0 0.0
    %459 = vmatprep.subr.mxu0 0.0
    %460 = vmatpush1.msra.mxu0 0.0
    %461 = vmatprep.subr.mxu0 0.0
    %462 = vmatpush1.msra.mxu0 0.0
    %463 = vmatprep.subr.mxu0 0.0
    %464 = vmatpush1.msra.mxu0 0.0
    %465 = vmatprep.mubr.f32.mxu0 0.0
    %466 = vmatmul.mubr.f32.gmra.mrb[0].mxu0 %v400
    %v467 = vpop.f32.mrb[0].mxu0
    %v468 = vadd.f32 0.0, %v467
    %v469 = vpop.f32.mrb[0].mxu0
    %470 = vdwg.mxu0
    %v471 = vadd.f32 %v312, %v468
    %v472 = vtanh.pop %v471
    %v473 = vmul.f32 %v399, %v472
    %v474 = vsub.f32 1.0, %v399
    %v475 = vadd.f32 %v473, %v474
    %v476 = vadd.f32 %v475, %v168
    %s477 = scalar_lea.vmem %s0, 8
    %v478 = vld [vmem:[%s477] sm:$0xff]
    %v480 = vsel %vm170, %v478, 0
    %482 = vmatprep.subr.mxu0 %v89
    %483 = vmatpush1.msra.mxu0 %v88
    %484 = vmatprep.subr.mxu0 %v93
    %485 = vmatpush1.msra.mxu0 %v92
    %486 = vmatprep.subr.mxu0 %v97
    %487 = vmatpush1.msra.mxu0 %v96
    %488 = vmatprep.subr.mxu0 %v101
    %489 = vmatpush1.msra.mxu0 %v100
    %490 = vmatprep.subr.mxu0 %v105
    %491 = vmatpush1.msra.mxu0 %v104
    %492 = vmatprep.subr.mxu0 %v109
    %493 = vmatpush1.msra.mxu0 %v108
    %494 = vmatprep.subr.mxu0 %v113
    %495 = vmatpush1.msra.mxu0 %v112
    %496 = vmatprep.subr.mxu0 %v117
    %497 = vmatpush1.msra.mxu0 %v116
    %498 = vmatprep.subr.mxu0 0.0
    %499 = vmatpush1.msra.mxu0 0.0
    %500 = vmatprep.subr.mxu0 0.0
    %501 = vmatpush1.msra.mxu0 0.0
    %502 = vmatprep.subr.mxu0 0.0
    %503 = vmatpush1.msra.mxu0 0.0
    %504 = vmatprep.subr.mxu0 0.0
    %505 = vmatpush1.msra.mxu0 0.0
    %506 = vmatprep.subr.mxu0 0.0
    %507 = vmatpush1.msra.mxu0 0.0
    %508 = vmatprep.subr.mxu0 0.0
    %509 = vmatpush1.msra.mxu0 0.0
    %510 = vmatprep.subr.mxu0 0.0
    %511 = vmatpush1.msra.mxu0 0.0
    %512 = vmatprep.subr.mxu0 0.0
    %513 = vmatpush1.msra.mxu0 0.0
    %514 = vmatprep.subr.mxu0 0.0
    %515 = vmatpush1.msra.mxu0 0.0
    %516 = vmatprep.subr.mxu0 0.0
    %517 = vmatpush1.msra.mxu0 0.0
    %518 = vmatprep.subr.mxu0 0.0
    %519 = vmatpush1.msra.mxu0 0.0
    %520 = vmatprep.subr.mxu0 0.0
    %521 = vmatpush1.msra.mxu0 0.0
    %522 = vmatprep.subr.mxu0 0.0
    %523 = vmatpush1.msra.mxu0 0.0
    %524 = vmatprep.subr.mxu0 0.0
    %525 = vmatpush1.msra.mxu0 0.0
    %526 = vmatprep.subr.mxu0 0.0
    %527 = vmatpush1.msra.mxu0 0.0
    %528 = vmatprep.subr.mxu0 0.0
    %529 = vmatpush1.msra.mxu0 0.0
    %530 = vmatprep.subr.mxu0 0.0
    %531 = vmatpush1.msra.mxu0 0.0
    %532 = vmatprep.subr.mxu0 0.0
    %533 = vmatpush1.msra.mxu0 0.0
    %534 = vmatprep.subr.mxu0 0.0
    %535 = vmatpush1.msra.mxu0 0.0
    %536 = vmatprep.subr.mxu0 0.0
    %537 = vmatpush1.msra.mxu0 0.0
    %538 = vmatprep.subr.mxu0 0.0
    %539 = vmatpush1.msra.mxu0 0.0
    %540 = vmatprep.subr.mxu0 0.0
    %541 = vmatpush1.msra.mxu0 0.0
    %542 = vmatprep.subr.mxu0 0.0
    %543 = vmatpush1.msra.mxu0 0.0
    %544 = vmatprep.subr.mxu0 0.0
    %545 = vmatpush1.msra.mxu0 0.0
    %546 = vmatprep.mubr.f32.mxu0 0.0
    %547 = vmatmul.mubr.f32.gmra.mrb[0].mxu0 %v480
    %v548 = vpop.f32.mrb[0].mxu0
    %v549 = vadd.f32 0.0, %v548
    %v550 = vpop.f32.mrb[0].mxu0
    %v551 = vadd.f32 0.0, %v550
    %552 = vdwg.mxu0
    %553 = vmatprep.subr.mxu0 %v91
    %554 = vmatpush1.msra.mxu0 %v90
    %555 = vmatprep.subr.mxu0 %v95
    %556 = vmatpush1.msra.mxu0 %v94
    %557 = vmatprep.subr.mxu0 %v99
    %558 = vmatpush1.msra.mxu0 %v98
    %559 = vmatprep.subr.mxu0 %v103
    %560 = vmatpush1.msra.mxu0 %v102
    %561 = vmatprep.subr.mxu0 %v107
    %562 = vmatpush1.msra.mxu0 %v106
    %563 = vmatprep.subr.mxu0 %v111
    %564 = vmatpush1.msra.mxu0 %v110
    %565 = vmatprep.subr.mxu0 %v115
    %566 = vmatpush1.msra.mxu0 %v114
    %567 = vmatprep.subr.mxu0 %v119
    %568 = vmatpush1.msra.mxu0 %v118
    %569 = vmatprep.subr.mxu0 0.0
    %570 = vmatpush1.msra.mxu0 0.0
    %571 = vmatprep.subr.mxu0 0.0
    %572 = vmatpush1.msra.mxu0 0.0
    %573 = vmatprep.subr.mxu0 0.0
    %574 = vmatpush1.msra.mxu0 0.0
    %575 = vmatprep.subr.mxu0 0.0
    %576 = vmatpush1.msra.mxu0 0.0
    %577 = vmatprep.subr.mxu0 0.0
    %578 = vmatpush1.msra.mxu0 0.0
    %579 = vmatprep.subr.mxu0 0.0
    %580 = vmatpush1.msra.mxu0 0.0
    %581 = vmatprep.subr.mxu0 0.0
    %582 = vmatpush1.msra.mxu0 0.0
    %583 = vmatprep.subr.mxu0 0.0
    %584 = vmatpush1.msra.mxu0 0.0
    %585 = vmatprep.subr.mxu0 0.0
    %586 = vmatpush1.msra.mxu0 0.0
    %587 = vmatprep.subr.mxu0 0.0
    %588 = vmatpush1.msra.mxu0 0.0
    %589 = vmatprep.subr.mxu0 0.0
    %590 = vmatpush1.msra.mxu0 0.0
    %591 = vmatprep.subr.mxu0 0.0
    %592 = vmatpush1.msra.mxu0 0.0
    %593 = vmatprep.subr.mxu0 0.0
    %594 = vmatpush1.msra.mxu0 0.0
    %595 = vmatprep.subr.mxu0 0.0
    %596 = vmatpush1.msra.mxu0 0.0
    %597 = vmatprep.subr.mxu0 0.0
    %598 = vmatpush1.msra.mxu0 0.0
    %599 = vmatprep.subr.mxu0 0.0
    %600 = vmatpush1.msra.mxu0 0.0
    %601 = vmatprep.subr.mxu0 0.0
    %602 = vmatpush1.msra.mxu0 0.0
    %603 = vmatprep.subr.mxu0 0.0
    %604 = vmatpush1.msra.mxu0 0.0
    %605 = vmatprep.subr.mxu0 0.0
    %606 = vmatpush1.msra.mxu0 0.0
    %607 = vmatprep.subr.mxu0 0.0
    %608 = vmatpush1.msra.mxu0 0.0
    %609 = vmatprep.subr.mxu0 0.0
    %610 = vmatpush1.msra.mxu0 0.0
    %611 = vmatprep.subr.mxu0 0.0
    %612 = vmatpush1.msra.mxu0 0.0
    %613 = vmatprep.subr.mxu0 0.0
    %614 = vmatpush1.msra.mxu0 0.0
    %615 = vmatprep.subr.mxu0 0.0
    %616 = vmatpush1.msra.mxu0 0.0
    %617 = vmatprep.mubr.f32.mxu0 0.0
    %618 = vmatmul.mubr.f32.gmra.mrb[0].mxu0 %v480
    %v619 = vpop.f32.mrb[0].mxu0
    %v620 = vadd.f32 0.0, %v619
    %v621 = vpop.f32.mrb[0].mxu0
    %622 = vdwg.mxu0
    %623 = vmatprep.subr.mxu0 %v121
    %624 = vmatpush1.msra.mxu0 %v120
    %625 = vmatprep.subr.mxu0 %v123
    %626 = vmatpush1.msra.mxu0 %v122
    %627 = vmatprep.subr.mxu0 %v125
    %628 = vmatpush1.msra.mxu0 %v124
    %629 = vmatprep.subr.mxu0 %v127
    %630 = vmatpush1.msra.mxu0 %v126
    %631 = vmatprep.subr.mxu0 %v129
    %632 = vmatpush1.msra.mxu0 %v128
    %633 = vmatprep.subr.mxu0 %v131
    %634 = vmatpush1.msra.mxu0 %v130
    %635 = vmatprep.subr.mxu0 %v133
    %636 = vmatpush1.msra.mxu0 %v132
    %637 = vmatprep.subr.mxu0 %v135
    %638 = vmatpush1.msra.mxu0 %v134
    %639 = vmatprep.subr.mxu0 %v137
    %640 = vmatpush1.msra.mxu0 %v136
    %641 = vmatprep.subr.mxu0 %v139
    %642 = vmatpush1.msra.mxu0 %v138
    %643 = vmatprep.subr.mxu0 %v141
    %644 = vmatpush1.msra.mxu0 %v140
    %645 = vmatprep.subr.mxu0 %v143
    %646 = vmatpush1.msra.mxu0 %v142
    %647 = vmatprep.subr.mxu0 %v145
    %648 = vmatpush1.msra.mxu0 %v144
    %649 = vmatprep.subr.mxu0 %v147
    %650 = vmatpush1.msra.mxu0 %v146
    %651 = vmatprep.subr.mxu0 %v149
    %652 = vmatpush1.msra.mxu0 %v148
    %653 = vmatprep.subr.mxu0 %v151
    %654 = vmatpush1.msra.mxu0 %v150
    %655 = vmatprep.subr.mxu0 0.0
    %656 = vmatpush1.msra.mxu0 0.0
    %657 = vmatprep.subr.mxu0 0.0
    %658 = vmatpush1.msra.mxu0 0.0
    %659 = vmatprep.subr.mxu0 0.0
    %660 = vmatpush1.msra.mxu0 0.0
    %661 = vmatprep.subr.mxu0 0.0
    %662 = vmatpush1.msra.mxu0 0.0
    %663 = vmatprep.subr.mxu0 0.0
    %664 = vmatpush1.msra.mxu0 0.0
    %665 = vmatprep.subr.mxu0 0.0
    %666 = vmatpush1.msra.mxu0 0.0
    %667 = vmatprep.subr.mxu0 0.0
    %668 = vmatpush1.msra.mxu0 0.0
    %669 = vmatprep.subr.mxu0 0.0
    %670 = vmatpush1.msra.mxu0 0.0
    %671 = vmatprep.subr.mxu0 0.0
    %672 = vmatpush1.msra.mxu0 0.0
    %673 = vmatprep.subr.mxu0 0.0
    %674 = vmatpush1.msra.mxu0 0.0
    %675 = vmatprep.subr.mxu0 0.0
    %676 = vmatpush1.msra.mxu0 0.0
    %677 = vmatprep.subr.mxu0 0.0
    %678 = vmatpush1.msra.mxu0 0.0
    %679 = vmatprep.subr.mxu0 0.0
    %680 = vmatpush1.msra.mxu0 0.0
    %681 = vmatprep.subr.mxu0 0.0
    %682 = vmatpush1.msra.mxu0 0.0
    %683 = vmatprep.subr.mxu0 0.0
    %684 = vmatpush1.msra.mxu0 0.0
    %685 = vmatprep.subr.mxu0 0.0
    %686 = vmatpush1.msra.mxu0 0.0
    %687 = vmatprep.mubr.f32.mxu0 0.0
    %688 = vmatmul.mubr.f32.gmra.mrb[0].mxu0 %v476
    %v689 = vpop.f32.mrb[0].mxu0
    %v690 = vadd.f32 0.0, %v689
    %v691 = vpop.f32.mrb[0].mxu0
    %v692 = vadd.f32 0.0, %v691
    %693 = vdwg.mxu0
    %v694 = vadd.f32 %v549, %v690
    %v695 = vadd.f32 %v551, %v692
    %v696 = vxor.u32 %v694, 2147483648
    %v697 = vxor.u32 %v695, 2147483648
    %v698 = vmul.f32 %v696, 1.442695
    %v699 = vpow.pop %v698
    %v700 = vmul.f32 %v697, 1.442695
    %v701 = vpow.pop %v700
    %v702 = vadd.f32 %v699, 1.0
    %v703 = vadd.f32 %v701, 1.0
    %v704 = vrcp.pop %v702
    %v705 = vmul.f32 1.0, %v704
    %v706 = vrcp.pop %v703
    %v707 = vmul.f32 1.0, %v706
    %v708 = vmul.f32 %v476, %v705
    %709 = vmatprep.subr.mxu0 0.0
    %710 = vmatpush1.msra.mxu0 %v152
    %711 = vmatprep.subr.mxu0 0.0
    %712 = vmatpush1.msra.mxu0 %v153
    %713 = vmatprep.subr.mxu0 0.0
    %714 = vmatpush1.msra.mxu0 %v154
    %715 = vmatprep.subr.mxu0 0.0
    %716 = vmatpush1.msra.mxu0 %v155
    %717 = vmatprep.subr.mxu0 0.0
    %718 = vmatpush1.msra.mxu0 %v156
    %719 = vmatprep.subr.mxu0 0.0
    %720 = vmatpush1.msra.mxu0 %v157
    %721 = vmatprep.subr.mxu0 0.0
    %722 = vmatpush1.msra.mxu0 %v158
    %723 = vmatprep.subr.mxu0 0.0
    %724 = vmatpush1.msra.mxu0 %v159
    %725 = vmatprep.subr.mxu0 0.0
    %726 = vmatpush1.msra.mxu0 %v160
    %727 = vmatprep.subr.mxu0 0.0
    %728 = vmatpush1.msra.mxu0 %v161
    %729 = vmatprep.subr.mxu0 0.0
    %730 = vmatpush1.msra.mxu0 %v162
    %731 = vmatprep.subr.mxu0 0.0
    %732 = vmatpush1.msra.mxu0 %v163
    %733 = vmatprep.subr.mxu0 0.0
    %734 = vmatpush1.msra.mxu0 %v164
    %735 = vmatprep.subr.mxu0 0.0
    %736 = vmatpush1.msra.mxu0 %v165
    %737 = vmatprep.subr.mxu0 0.0
    %738 = vmatpush1.msra.mxu0 %v166
    %739 = vmatprep.subr.mxu0 0.0
    %740 = vmatpush1.msra.mxu0 %v167
    %741 = vmatprep.subr.mxu0 0.0
    %742 = vmatpush1.msra.mxu0 0.0
    %743 = vmatprep.subr.mxu0 0.0
    %744 = vmatpush1.msra.mxu0 0.0
    %745 = vmatprep.subr.mxu0 0.0
    %746 = vmatpush1.msra.mxu0 0.0
    %747 = vmatprep.subr.mxu0 0.0
    %748 = vmatpush1.msra.mxu0 0.0
    %749 = vmatprep.subr.mxu0 0.0
    %750 = vmatpush1.msra.mxu0 0.0
    %751 = vmatprep.subr.mxu0 0.0
    %752 = vmatpush1.msra.mxu0 0.0
    %753 = vmatprep.subr.mxu0 0.0
    %754 = vmatpush1.msra.mxu0 0.0
    %755 = vmatprep.subr.mxu0 0.0
    %756 = vmatpush1.msra.mxu0 0.0
    %757 = vmatprep.subr.mxu0 0.0
    %758 = vmatpush1.msra.mxu0 0.0
    %759 = vmatprep.subr.mxu0 0.0
    %760 = vmatpush1.msra.mxu0 0.0
    %761 = vmatprep.subr.mxu0 0.0
    %762 = vmatpush1.msra.mxu0 0.0
    %763 = vmatprep.subr.mxu0 0.0
    %764 = vmatpush1.msra.mxu0 0.0
    %765 = vmatprep.subr.mxu0 0.0
    %766 = vmatpush1.msra.mxu0 0.0
    %767 = vmatprep.subr.mxu0 0.0
    %768 = vmatpush1.msra.mxu0 0.0
    %769 = vmatprep.subr.mxu0 0.0
    %770 = vmatpush1.msra.mxu0 0.0
    %771 = vmatprep.subr.mxu0 0.0
    %772 = vmatpush1.msra.mxu0 0.0
    %773 = vmatprep.mubr.f32.mxu0 0.0
    %774 = vmatmul.mubr.f32.gmra.mrb[0].mxu0 %v708
    %v775 = vpop.f32.mrb[0].mxu0
    %v776 = vadd.f32 0.0, %v775
    %v777 = vpop.f32.mrb[0].mxu0
    %778 = vdwg.mxu0
    %v779 = vadd.f32 %v620, %v776
    %v780 = vtanh.pop %v779
    %v781 = vmul.f32 %v707, %v780
    %v782 = vsub.f32 1.0, %v707
    %v783 = vadd.f32 %v781, %v782
    %v784 = vadd.f32 %v783, %v476
    %s785 = scalar_lea.vmem %s0, 16
    %v786 = vld [vmem:[%s785] sm:$0xff]
    %v788 = vsel %vm170, %v786, 0
    %790 = vmatprep.subr.mxu0 %v89
    %791 = vmatpush1.msra.mxu0 %v88
    %792 = vmatprep.subr.mxu0 %v93
    %793 = vmatpush1.msra.mxu0 %v92
    %794 = vmatprep.subr.mxu0 %v97
    %795 = vmatpush1.msra.mxu0 %v96
    %796 = vmatprep.subr.mxu0 %v101
    %797 = vmatpush1.msra.mxu0 %v100
    %798 = vmatprep.subr.mxu0 %v105
    %799 = vmatpush1.msra.mxu0 %v104
    %800 = vmatprep.subr.mxu0 %v109
    %801 = vmatpush1.msra.mxu0 %v108
    %802 = vmatprep.subr.mxu0 %v113
    %803 = vmatpush1.msra.mxu0 %v112
    %804 = vmatprep.subr.mxu0 %v117
    %805 = vmatpush1.msra.mxu0 %v116
    %806 = vmatprep.subr.mxu0 0.0
    %807 = vmatpush1.msra.mxu0 0.0
    %808 = vmatprep.subr.mxu0 0.0
    %809 = vmatpush1.msra.mxu0 0.0
    %810 = vmatprep.subr.mxu0 0.0
    %811 = vmatpush1.msra.mxu0 0.0
    %812 = vmatprep.subr.mxu0 0.0
    %813 = vmatpush1.msra.mxu0 0.0
    %814 = vmatprep.subr.mxu0 0.0
    %815 = vmatpush1.msra.mxu0 0.0
    %816 = vmatprep.subr.mxu0 0.0
    %817 = vmatpush1.msra.mxu0 0.0
    %818 = vmatprep.subr.mxu0 0.0
    %819 = vmatpush1.msra.mxu0 0.0
    %820 = vmatprep.subr.mxu0 0.0
    %821 = vmatpush1.msra.mxu0 0.0
    %822 = vmatprep.subr.mxu0 0.0
    %823 = vmatpush1.msra.mxu0 0.0
    %824 = vmatprep.subr.mxu0 0.0
    %825 = vmatpush1.msra.mxu0 0.0
    %826 = vmatprep.subr.mxu0 0.0
    %827 = vmatpush1.msra.mxu0 0.0
    %828 = vmatprep.subr.mxu0 0.0
    %829 = vmatpush1.msra.mxu0 0.0
    %830 = vmatprep.subr.mxu0 0.0
    %831 = vmatpush1.msra.mxu0 0.0
    %832 = vmatprep.subr.mxu0 0.0
    %833 = vmatpush1.msra.mxu0 0.0
    %834 = vmatprep.subr.mxu0 0.0
    %835 = vmatpush1.msra.mxu0 0.0
    %836 = vmatprep.subr.mxu0 0.0
    %837 = vmatpush1.msra.mxu0 0.0
    %838 = vmatprep.subr.mxu0 0.0
    %839 = vmatpush1.msra.mxu0 0.0
    %840 = vmatprep.subr.mxu0 0.0
    %841 = vmatpush1.msra.mxu0 0.0
    %842 = vmatprep.subr.mxu0 0.0
    %843 = vmatpush1.msra.mxu0 0.0
    %844 = vmatprep.subr.mxu0 0.0
    %845 = vmatpush1.msra.mxu0 0.0
    %846 = vmatprep.subr.mxu0 0.0
    %847 = vmatpush1.msra.mxu0 0.0
    %848 = vmatprep.subr.mxu0 0.0
    %849 = vmatpush1.msra.mxu0 0.0
    %850 = vmatprep.subr.mxu0 0.0
    %851 = vmatpush1.msra.mxu0 0.0
    %852 = vmatprep.subr.mxu0 0.0
    %853 = vmatpush1.msra.mxu0 0.0
    %854 = vmatprep.mubr.f32.mxu0 0.0
    %855 = vmatmul.mubr.f32.gmra.mrb[0].mxu0 %v788
    %v856 = vpop.f32.mrb[0].mxu0
    %v857 = vadd.f32 0.0, %v856
    %v858 = vpop.f32.mrb[0].mxu0
    %v859 = vadd.f32 0.0, %v858
    %860 = vdwg.mxu0
    %861 = vmatprep.subr.mxu0 %v91
    %862 = vmatpush1.msra.mxu0 %v90
    %863 = vmatprep.subr.mxu0 %v95
    %864 = vmatpush1.msra.mxu0 %v94
    %865 = vmatprep.subr.mxu0 %v99
    %866 = vmatpush1.msra.mxu0 %v98
    %867 = vmatprep.subr.mxu0 %v103
    %868 = vmatpush1.msra.mxu0 %v102
    %869 = vmatprep.subr.mxu0 %v107
    %870 = vmatpush1.msra.mxu0 %v106
    %871 = vmatprep.subr.mxu0 %v111
    %872 = vmatpush1.msra.mxu0 %v110
    %873 = vmatprep.subr.mxu0 %v115
    %874 = vmatpush1.msra.mxu0 %v114
    %875 = vmatprep.subr.mxu0 %v119
    %876 = vmatpush1.msra.mxu0 %v118
    %877 = vmatprep.subr.mxu0 0.0
    %878 = vmatpush1.msra.mxu0 0.0
    %879 = vmatprep.subr.mxu0 0.0
    %880 = vmatpush1.msra.mxu0 0.0
    %881 = vmatprep.subr.mxu0 0.0
    %882 = vmatpush1.msra.mxu0 0.0
    %883 = vmatprep.subr.mxu0 0.0
    %884 = vmatpush1.msra.mxu0 0.0
    %885 = vmatprep.subr.mxu0 0.0
    %886 = vmatpush1.msra.mxu0 0.0
    %887 = vmatprep.subr.mxu0 0.0
    %888 = vmatpush1.msra.mxu0 0.0
    %889 = vmatprep.subr.mxu0 0.0
    %890 = vmatpush1.msra.mxu0 0.0
    %891 = vmatprep.subr.mxu0 0.0
    %892 = vmatpush1.msra.mxu0 0.0
    %893 = vmatprep.subr.mxu0 0.0
    %894 = vmatpush1.msra.mxu0 0.0
    %895 = vmatprep.subr.mxu0 0.0
    %896 = vmatpush1.msra.mxu0 0.0
    %897 = vmatprep.subr.mxu0 0.0
    %898 = vmatpush1.msra.mxu0 0.0
    %899 = vmatprep.subr.mxu0 0.0
    %900 = vmatpush1.msra.mxu0 0.0
    %901 = vmatprep.subr.mxu0 0.0
    %902 = vmatpush1.msra.mxu0 0.0
    %903 = vmatprep.subr.mxu0 0.0
    %904 = vmatpush1.msra.mxu0 0.0
    %905 = vmatprep.subr.mxu0 0.0
    %906 = vmatpush1.msra.mxu0 0.0
    %907 = vmatprep.subr.mxu0 0.0
    %908 = vmatpush1.msra.mxu0 0.0
    %909 = vmatprep.subr.mxu0 0.0
    %910 = vmatpush1.msra.mxu0 0.0
    %911 = vmatprep.subr.mxu0 0.0
    %912 = vmatpush1.msra.mxu0 0.0
    %913 = vmatprep.subr.mxu0 0.0
    %914 = vmatpush1.msra.mxu0 0.0
    %915 = vmatprep.subr.mxu0 0.0
    %916 = vmatpush1.msra.mxu0 0.0
    %917 = vmatprep.subr.mxu0 0.0
    %918 = vmatpush1.msra.mxu0 0.0
    %919 = vmatprep.subr.mxu0 0.0
    %920 = vmatpush1.msra.mxu0 0.0
    %921 = vmatprep.subr.mxu0 0.0
    %922 = vmatpush1.msra.mxu0 0.0
    %923 = vmatprep.subr.mxu0 0.0
    %924 = vmatpush1.msra.mxu0 0.0
    %925 = vmatprep.mubr.f32.mxu0 0.0
    %926 = vmatmul.mubr.f32.gmra.mrb[0].mxu0 %v788
    %v927 = vpop.f32.mrb[0].mxu0
    %v928 = vadd.f32 0.0, %v927
    %v929 = vpop.f32.mrb[0].mxu0
    %930 = vdwg.mxu0
    %931 = vmatprep.subr.mxu0 %v121
    %932 = vmatpush1.msra.mxu0 %v120
    %933 = vmatprep.subr.mxu0 %v123
    %934 = vmatpush1.msra.mxu0 %v122
    %935 = vmatprep.subr.mxu0 %v125
    %936 = vmatpush1.msra.mxu0 %v124
    %937 = vmatprep.subr.mxu0 %v127
    %938 = vmatpush1.msra.mxu0 %v126
    %939 = vmatprep.subr.mxu0 %v129
    %940 = vmatpush1.msra.mxu0 %v128
    %941 = vmatprep.subr.mxu0 %v131
    %942 = vmatpush1.msra.mxu0 %v130
    %943 = vmatprep.subr.mxu0 %v133
    %944 = vmatpush1.msra.mxu0 %v132
    %945 = vmatprep.subr.mxu0 %v135
    %946 = vmatpush1.msra.mxu0 %v134
    %947 = vmatprep.subr.mxu0 %v137
    %948 = vmatpush1.msra.mxu0 %v136
    %949 = vmatprep.subr.mxu0 %v139
    %950 = vmatpush1.msra.mxu0 %v138
    %951 = vmatprep.subr.mxu0 %v141
    %952 = vmatpush1.msra.mxu0 %v140
    %953 = vmatprep.subr.mxu0 %v143
    %954 = vmatpush1.msra.mxu0 %v142
    %955 = vmatprep.subr.mxu0 %v145
    %956 = vmatpush1.msra.mxu0 %v144
    %957 = vmatprep.subr.mxu0 %v147
    %958 = vmatpush1.msra.mxu0 %v146
    %959 = vmatprep.subr.mxu0 %v149
    %960 = vmatpush1.msra.mxu0 %v148
    %961 = vmatprep.subr.mxu0 %v151
    %962 = vmatpush1.msra.mxu0 %v150
    %963 = vmatprep.subr.mxu0 0.0
    %964 = vmatpush1.msra.mxu0 0.0
    %965 = vmatprep.subr.mxu0 0.0
    %966 = vmatpush1.msra.mxu0 0.0
    %967 = vmatprep.subr.mxu0 0.0
    %968 = vmatpush1.msra.mxu0 0.0
    %969 = vmatprep.subr.mxu0 0.0
    %970 = vmatpush1.msra.mxu0 0.0
    %971 = vmatprep.subr.mxu0 0.0
    %972 = vmatpush1.msra.mxu0 0.0
    %973 = vmatprep.subr.mxu0 0.0
    %974 = vmatpush1.msra.mxu0 0.0
    %975 = vmatprep.subr.mxu0 0.0
    %976 = vmatpush1.msra.mxu0 0.0
    %977 = vmatprep.subr.mxu0 0.0
    %978 = vmatpush1.msra.mxu0 0.0
    %979 = vmatprep.subr.mxu0 0.0
    %980 = vmatpush1.msra.mxu0 0.0
    %981 = vmatprep.subr.mxu0 0.0
    %982 = vmatpush1.msra.mxu0 0.0
    %983 = vmatprep.subr.mxu0 0.0
    %984 = vmatpush1.msra.mxu0 0.0
    %985 = vmatprep.subr.mxu0 0.0
    %986 = vmatpush1.msra.mxu0 0.0
    %987 = vmatprep.subr.mxu0 0.0
    %988 = vmatpush1.msra.mxu0 0.0
    %989 = vmatprep.subr.mxu0 0.0
    %990 = vmatpush1.msra.mxu0 0.0
    %991 = vmatprep.subr.mxu0 0.0
    %992 = vmatpush1.msra.mxu0 0.0
    %993 = vmatprep.subr.mxu0 0.0
    %994 = vmatpush1.msra.mxu0 0.0
    %995 = vmatprep.mubr.f32.mxu0 0.0
    %996 = vmatmul.mubr.f32.gmra.mrb[0].mxu0 %v784
    %v997 = vpop.f32.mrb[0].mxu0
    %v998 = vadd.f32 0.0, %v997
    %v999 = vpop.f32.mrb[0].mxu0
    %v1000 = vadd.f32 0.0, %v999
    %1001 = vdwg.mxu0
    %v1002 = vadd.f32 %v857, %v998
    %v1003 = vadd.f32 %v859, %v1000
    %v1004 = vxor.u32 %v1002, 2147483648
    %v1005 = vxor.u32 %v1003, 2147483648
    %v1006 = vmul.f32 %v1004, 1.442695
    %v1007 = vpow.pop %v1006
    %v1008 = vmul.f32 %v1005, 1.442695
    %v1009 = vpow.pop %v1008
    %v1010 = vadd.f32 %v1007, 1.0
    %v1011 = vadd.f32 %v1009, 1.0
    %v1012 = vrcp.pop %v1010
    %v1013 = vmul.f32 1.0, %v1012
    %v1014 = vrcp.pop %v1011
    %v1015 = vmul.f32 1.0, %v1014
    %v1016 = vmul.f32 %v784, %v1013
    %1017 = vmatprep.subr.mxu0 0.0
    %1018 = vmatpush1.msra.mxu0 %v152
    %1019 = vmatprep.subr.mxu0 0.0
    %1020 = vmatpush1.msra.mxu0 %v153
    %1021 = vmatprep.subr.mxu0 0.0
    %1022 = vmatpush1.msra.mxu0 %v154
    %1023 = vmatprep.subr.mxu0 0.0
    %1024 = vmatpush1.msra.mxu0 %v155
    %1025 = vmatprep.subr.mxu0 0.0
    %1026 = vmatpush1.msra.mxu0 %v156
    %1027 = vmatprep.subr.mxu0 0.0
    %1028 = vmatpush1.msra.mxu0 %v157
    %1029 = vmatprep.subr.mxu0 0.0
    %1030 = vmatpush1.msra.mxu0 %v158
    %1031 = vmatprep.subr.mxu0 0.0
    %1032 = vmatpush1.msra.mxu0 %v159
    %1033 = vmatprep.subr.mxu0 0.0
    %1034 = vmatpush1.msra.mxu0 %v160
    %1035 = vmatprep.subr.mxu0 0.0
    %1036 = vmatpush1.msra.mxu0 %v161
    %1037 = vmatprep.subr.mxu0 0.0
    %1038 = vmatpush1.msra.mxu0 %v162
    %1039 = vmatprep.subr.mxu0 0.0
    %1040 = vmatpush1.msra.mxu0 %v163
    %1041 = vmatprep.subr.mxu0 0.0
    %1042 = vmatpush1.msra.mxu0 %v164
    %1043 = vmatprep.subr.mxu0 0.0
    %1044 = vmatpush1.msra.mxu0 %v165
    %1045 = vmatprep.subr.mxu0 0.0
    %1046 = vmatpush1.msra.mxu0 %v166
    %1047 = vmatprep.subr.mxu0 0.0
    %1048 = vmatpush1.msra.mxu0 %v167
    %1049 = vmatprep.subr.mxu0 0.0
    %1050 = vmatpush1.msra.mxu0 0.0
    %1051 = vmatprep.subr.mxu0 0.0
    %1052 = vmatpush1.msra.mxu0 0.0
    %1053 = vmatprep.subr.mxu0 0.0
    %1054 = vmatpush1.msra.mxu0 0.0
    %1055 = vmatprep.subr.mxu0 0.0
    %1056 = vmatpush1.msra.mxu0 0.0
    %1057 = vmatprep.subr.mxu0 0.0
    %1058 = vmatpush1.msra.mxu0 0.0
    %1059 = vmatprep.subr.mxu0 0.0
    %1060 = vmatpush1.msra.mxu0 0.0
    %1061 = vmatprep.subr.mxu0 0.0
    %1062 = vmatpush1.msra.mxu0 0.0
    %1063 = vmatprep.subr.mxu0 0.0
    %1064 = vmatpush1.msra.mxu0 0.0
    %1065 = vmatprep.subr.mxu0 0.0
    %1066 = vmatpush1.msra.mxu0 0.0
    %1067 = vmatprep.subr.mxu0 0.0
    %1068 = vmatpush1.msra.mxu0 0.0
    %1069 = vmatprep.subr.mxu0 0.0
    %1070 = vmatpush1.msra.mxu0 0.0
    %1071 = vmatprep.subr.mxu0 0.0
    %1072 = vmatpush1.msra.mxu0 0.0
    %1073 = vmatprep.subr.mxu0 0.0
    %1074 = vmatpush1.msra.mxu0 0.0
    %1075 = vmatprep.subr.mxu0 0.0
    %1076 = vmatpush1.msra.mxu0 0.0
    %1077 = vmatprep.subr.mxu0 0.0
    %1078 = vmatpush1.msra.mxu0 0.0
    %1079 = vmatprep.subr.mxu0 0.0
    %1080 = vmatpush1.msra.mxu0 0.0
    %1081 = vmatprep.mubr.f32.mxu0 0.0
    %1082 = vmatmul.mubr.f32.gmra.mrb[0].mxu0 %v1016
    %v1083 = vpop.f32.mrb[0].mxu0
    %v1084 = vadd.f32 0.0, %v1083
    %v1085 = vpop.f32.mrb[0].mxu0
    %1086 = vdwg.mxu0
    %v1087 = vadd.f32 %v928, %v1084
    %v1088 = vtanh.pop %v1087
    %v1089 = vmul.f32 %v1015, %v1088
    %v1090 = vsub.f32 1.0, %v1015
    %v1091 = vadd.f32 %v1089, %v1090
    %v1092 = vadd.f32 %v1091, %v784
    %s1093 = scalar_lea.vmem %s0, 24
    %v1094 = vld [vmem:[%s1093] sm:$0xff]
    %v1096 = vsel %vm170, %v1094, 0
    %1098 = vmatprep.subr.mxu0 %v89
    %1099 = vmatpush1.msra.mxu0 %v88
    %1100 = vmatprep.subr.mxu0 %v93
    %1101 = vmatpush1.msra.mxu0 %v92
    %1102 = vmatprep.subr.mxu0 %v97
    %1103 = vmatpush1.msra.mxu0 %v96
    %1104 = vmatprep.subr.mxu0 %v101
    %1105 = vmatpush1.msra.mxu0 %v100
    %1106 = vmatprep.subr.mxu0 %v105
    %1107 = vmatpush1.msra.mxu0 %v104
    %1108 = vmatprep.subr.mxu0 %v109
    %1109 = vmatpush1.msra.mxu0 %v108
    %1110 = vmatprep.subr.mxu0 %v113
    %1111 = vmatpush1.msra.mxu0 %v112
    %1112 = vmatprep.subr.mxu0 %v117
    %1113 = vmatpush1.msra.mxu0 %v116
    %1114 = vmatprep.subr.mxu0 0.0
    %1115 = vmatpush1.msra.mxu0 0.0
    %1116 = vmatprep.subr.mxu0 0.0
    %1117 = vmatpush1.msra.mxu0 0.0
    %1118 = vmatprep.subr.mxu0 0.0
    %1119 = vmatpush1.msra.mxu0 0.0
    %1120 = vmatprep.subr.mxu0 0.0
    %1121 = vmatpush1.msra.mxu0 0.0
    %1122 = vmatprep.subr.mxu0 0.0
    %1123 = vmatpush1.msra.mxu0 0.0
    %1124 = vmatprep.subr.mxu0 0.0
    %1125 = vmatpush1.msra.mxu0 0.0
    %1126 = vmatprep.subr.mxu0 0.0
    %1127 = vmatpush1.msra.mxu0 0.0
    %1128 = vmatprep.subr.mxu0 0.0
    %1129 = vmatpush1.msra.mxu0 0.0
    %1130 = vmatprep.subr.mxu0 0.0
    %1131 = vmatpush1.msra.mxu0 0.0
    %1132 = vmatprep.subr.mxu0 0.0
    %1133 = vmatpush1.msra.mxu0 0.0
    %1134 = vmatprep.subr.mxu0 0.0
    %1135 = vmatpush1.msra.mxu0 0.0
    %1136 = vmatprep.subr.mxu0 0.0
    %1137 = vmatpush1.msra.mxu0 0.0
    %1138 = vmatprep.subr.mxu0 0.0
    %1139 = vmatpush1.msra.mxu0 0.0
    %1140 = vmatprep.subr.mxu0 0.0
    %1141 = vmatpush1.msra.mxu0 0.0
    %1142 = vmatprep.subr.mxu0 0.0
    %1143 = vmatpush1.msra.mxu0 0.0
    %1144 = vmatprep.subr.mxu0 0.0
    %1145 = vmatpush1.msra.mxu0 0.0
    %1146 = vmatprep.subr.mxu0 0.0
    %1147 = vmatpush1.msra.mxu0 0.0
    %1148 = vmatprep.subr.mxu0 0.0
    %1149 = vmatpush1.msra.mxu0 0.0
    %1150 = vmatprep.subr.mxu0 0.0
    %1151 = vmatpush1.msra.mxu0 0.0
    %1152 = vmatprep.subr.mxu0 0.0
    %1153 = vmatpush1.msra.mxu0 0.0
    %1154 = vmatprep.subr.mxu0 0.0
    %1155 = vmatpush1.msra.mxu0 0.0
    %1156 = vmatprep.subr.mxu0 0.0
    %1157 = vmatpush1.msra.mxu0 0.0
    %1158 = vmatprep.subr.mxu0 0.0
    %1159 = vmatpush1.msra.mxu0 0.0
    %1160 = vmatprep.subr.mxu0 0.0
    %1161 = vmatpush1.msra.mxu0 0.0
    %1162 = vmatprep.mubr.f32.mxu0 0.0
    %1163 = vmatmul.mubr.f32.gmra.mrb[0].mxu0 %v1096
    %v1164 = vpop.f32.mrb[0].mxu0
    %v1165 = vadd.f32 0.0, %v1164
    %v1166 = vpop.f32.mrb[0].mxu0
    %v1167 = vadd.f32 0.0, %v1166
    %1168 = vdwg.mxu0
    %1169 = vmatprep.subr.mxu0 %v91
    %1170 = vmatpush1.msra.mxu0 %v90
    %1171 = vmatprep.subr.mxu0 %v95
    %1172 = vmatpush1.msra.mxu0 %v94
    %1173 = vmatprep.subr.mxu0 %v99
    %1174 = vmatpush1.msra.mxu0 %v98
    %1175 = vmatprep.subr.mxu0 %v103
    %1176 = vmatpush1.msra.mxu0 %v102
    %1177 = vmatprep.subr.mxu0 %v107
    %1178 = vmatpush1.msra.mxu0 %v106
    %1179 = vmatprep.subr.mxu0 %v111
    %1180 = vmatpush1.msra.mxu0 %v110
    %1181 = vmatprep.subr.mxu0 %v115
    %1182 = vmatpush1.msra.mxu0 %v114
    %1183 = vmatprep.subr.mxu0 %v119
    %1184 = vmatpush1.msra.mxu0 %v118
    %1185 = vmatprep.subr.mxu0 0.0
    %1186 = vmatpush1.msra.mxu0 0.0
    %1187 = vmatprep.subr.mxu0 0.0
    %1188 = vmatpush1.msra.mxu0 0.0
    %1189 = vmatprep.subr.mxu0 0.0
    %1190 = vmatpush1.msra.mxu0 0.0
    %1191 = vmatprep.subr.mxu0 0.0
    %1192 = vmatpush1.msra.mxu0 0.0
    %1193 = vmatprep.subr.mxu0 0.0
    %1194 = vmatpush1.msra.mxu0 0.0
    %1195 = vmatprep.subr.mxu0 0.0
    %1196 = vmatpush1.msra.mxu0 0.0
    %1197 = vmatprep.subr.mxu0 0.0
    %1198 = vmatpush1.msra.mxu0 0.0
    %1199 = vmatprep.subr.mxu0 0.0
    %1200 = vmatpush1.msra.mxu0 0.0
    %1201 = vmatprep.subr.mxu0 0.0
    %1202 = vmatpush1.msra.mxu0 0.0
    %1203 = vmatprep.subr.mxu0 0.0
    %1204 = vmatpush1.msra.mxu0 0.0
    %1205 = vmatprep.subr.mxu0 0.0
    %1206 = vmatpush1.msra.mxu0 0.0
    %1207 = vmatprep.subr.mxu0 0.0
    %1208 = vmatpush1.msra.mxu0 0.0
    %1209 = vmatprep.subr.mxu0 0.0
    %1210 = vmatpush1.msra.mxu0 0.0
    %1211 = vmatprep.subr.mxu0 0.0
    %1212 = vmatpush1.msra.mxu0 0.0
    %1213 = vmatprep.subr.mxu0 0.0
    %1214 = vmatpush1.msra.mxu0 0.0
    %1215 = vmatprep.subr.mxu0 0.0
    %1216 = vmatpush1.msra.mxu0 0.0
    %1217 = vmatprep.subr.mxu0 0.0
    %1218 = vmatpush1.msra.mxu0 0.0
    %1219 = vmatprep.subr.mxu0 0.0
    %1220 = vmatpush1.msra.mxu0 0.0
    %1221 = vmatprep.subr.mxu0 0.0
    %1222 = vmatpush1.msra.mxu0 0.0
    %1223 = vmatprep.subr.mxu0 0.0
    %1224 = vmatpush1.msra.mxu0 0.0
    %1225 = vmatprep.subr.mxu0 0.0
    %1226 = vmatpush1.msra.mxu0 0.0
    %1227 = vmatprep.subr.mxu0 0.0
    %1228 = vmatpush1.msra.mxu0 0.0
    %1229 = vmatprep.subr.mxu0 0.0
    %1230 = vmatpush1.msra.mxu0 0.0
    %1231 = vmatprep.subr.mxu0 0.0
    %1232 = vmatpush1.msra.mxu0 0.0
    %1233 = vmatprep.mubr.f32.mxu0 0.0
    %1234 = vmatmul.mubr.f32.gmra.mrb[0].mxu0 %v1096
    %v1235 = vpop.f32.mrb[0].mxu0
    %v1236 = vadd.f32 0.0, %v1235
    %v1237 = vpop.f32.mrb[0].mxu0
    %1238 = vdwg.mxu0
    %1239 = vmatprep.subr.mxu0 %v121
    %1240 = vmatpush1.msra.mxu0 %v120
    %1241 = vmatprep.subr.mxu0 %v123
    %1242 = vmatpush1.msra.mxu0 %v122
    %1243 = vmatprep.subr.mxu0 %v125
    %1244 = vmatpush1.msra.mxu0 %v124
    %1245 = vmatprep.subr.mxu0 %v127
    %1246 = vmatpush1.msra.mxu0 %v126
    %1247 = vmatprep.subr.mxu0 %v129
    %1248 = vmatpush1.msra.mxu0 %v128
    %1249 = vmatprep.subr.mxu0 %v131
    %1250 = vmatpush1.msra.mxu0 %v130
    %1251 = vmatprep.subr.mxu0 %v133
    %1252 = vmatpush1.msra.mxu0 %v132
    %1253 = vmatprep.subr.mxu0 %v135
    %1254 = vmatpush1.msra.mxu0 %v134
    %1255 = vmatprep.subr.mxu0 %v137
    %1256 = vmatpush1.msra.mxu0 %v136
    %1257 = vmatprep.subr.mxu0 %v139
    %1258 = vmatpush1.msra.mxu0 %v138
    %1259 = vmatprep.subr.mxu0 %v141
    %1260 = vmatpush1.msra.mxu0 %v140
    %1261 = vmatprep.subr.mxu0 %v143
    %1262 = vmatpush1.msra.mxu0 %v142
    %1263 = vmatprep.subr.mxu0 %v145
    %1264 = vmatpush1.msra.mxu0 %v144
    %1265 = vmatprep.subr.mxu0 %v147
    %1266 = vmatpush1.msra.mxu0 %v146
    %1267 = vmatprep.subr.mxu0 %v149
    %1268 = vmatpush1.msra.mxu0 %v148
    %1269 = vmatprep.subr.mxu0 %v151
    %1270 = vmatpush1.msra.mxu0 %v150
    %1271 = vmatprep.subr.mxu0 0.0
    %1272 = vmatpush1.msra.mxu0 0.0
    %1273 = vmatprep.subr.mxu0 0.0
    %1274 = vmatpush1.msra.mxu0 0.0
    %1275 = vmatprep.subr.mxu0 0.0
    %1276 = vmatpush1.msra.mxu0 0.0
    %1277 = vmatprep.subr.mxu0 0.0
    %1278 = vmatpush1.msra.mxu0 0.0
    %1279 = vmatprep.subr.mxu0 0.0
    %1280 = vmatpush1.msra.mxu0 0.0
    %1281 = vmatprep.subr.mxu0 0.0
    %1282 = vmatpush1.msra.mxu0 0.0
    %1283 = vmatprep.subr.mxu0 0.0
    %1284 = vmatpush1.msra.mxu0 0.0
    %1285 = vmatprep.subr.mxu0 0.0
    %1286 = vmatpush1.msra.mxu0 0.0
    %1287 = vmatprep.subr.mxu0 0.0
    %1288 = vmatpush1.msra.mxu0 0.0
    %1289 = vmatprep.subr.mxu0 0.0
    %1290 = vmatpush1.msra.mxu0 0.0
    %1291 = vmatprep.subr.mxu0 0.0
    %1292 = vmatpush1.msra.mxu0 0.0
    %1293 = vmatprep.subr.mxu0 0.0
    %1294 = vmatpush1.msra.mxu0 0.0
    %1295 = vmatprep.subr.mxu0 0.0
    %1296 = vmatpush1.msra.mxu0 0.0
    %1297 = vmatprep.subr.mxu0 0.0
    %1298 = vmatpush1.msra.mxu0 0.0
    %1299 = vmatprep.subr.mxu0 0.0
    %1300 = vmatpush1.msra.mxu0 0.0
    %1301 = vmatprep.subr.mxu0 0.0
    %1302 = vmatpush1.msra.mxu0 0.0
    %1303 = vmatprep.mubr.f32.mxu0 0.0
    %1304 = vmatmul.mubr.f32.gmra.mrb[0].mxu0 %v1092
    %v1305 = vpop.f32.mrb[0].mxu0
    %v1306 = vadd.f32 0.0, %v1305
    %v1307 = vpop.f32.mrb[0].mxu0
    %v1308 = vadd.f32 0.0, %v1307
    %1309 = vdwg.mxu0
    %v1310 = vadd.f32 %v1165, %v1306
    %v1311 = vadd.f32 %v1167, %v1308
    %v1312 = vxor.u32 %v1310, 2147483648
    %v1313 = vxor.u32 %v1311, 2147483648
    %v1314 = vmul.f32 %v1312, 1.442695
    %v1315 = vpow.pop %v1314
    %v1316 = vmul.f32 %v1313, 1.442695
    %v1317 = vpow.pop %v1316
    %v1318 = vadd.f32 %v1315, 1.0
    %v1319 = vadd.f32 %v1317, 1.0
    %v1320 = vrcp.pop %v1318
    %v1321 = vmul.f32 1.0, %v1320
    %v1322 = vrcp.pop %v1319
    %v1323 = vmul.f32 1.0, %v1322
    %v1324 = vmul.f32 %v1092, %v1321
    %1325 = vmatprep.subr.mxu0 0.0
    %1326 = vmatpush1.msra.mxu0 %v152
    %1327 = vmatprep.subr.mxu0 0.0
    %1328 = vmatpush1.msra.mxu0 %v153
    %1329 = vmatprep.subr.mxu0 0.0
    %1330 = vmatpush1.msra.mxu0 %v154
    %1331 = vmatprep.subr.mxu0 0.0
    %1332 = vmatpush1.msra.mxu0 %v155
    %1333 = vmatprep.subr.mxu0 0.0
    %1334 = vmatpush1.msra.mxu0 %v156
    %1335 = vmatprep.subr.mxu0 0.0
    %1336 = vmatpush1.msra.mxu0 %v157
    %1337 = vmatprep.subr.mxu0 0.0
    %1338 = vmatpush1.msra.mxu0 %v158
    %1339 = vmatprep.subr.mxu0 0.0
    %1340 = vmatpush1.msra.mxu0 %v159
    %1341 = vmatprep.subr.mxu0 0.0
    %1342 = vmatpush1.msra.mxu0 %v160
    %1343 = vmatprep.subr.mxu0 0.0
    %1344 = vmatpush1.msra.mxu0 %v161
    %1345 = vmatprep.subr.mxu0 0.0
    %1346 = vmatpush1.msra.mxu0 %v162
    %1347 = vmatprep.subr.mxu0 0.0
    %1348 = vmatpush1.msra.mxu0 %v163
    %1349 = vmatprep.subr.mxu0 0.0
    %1350 = vmatpush1.msra.mxu0 %v164
    %1351 = vmatprep.subr.mxu0 0.0
    %1352 = vmatpush1.msra.mxu0 %v165
    %1353 = vmatprep.subr.mxu0 0.0
    %1354 = vmatpush1.msra.mxu0 %v166
    %1355 = vmatprep.subr.mxu0 0.0
    %1356 = vmatpush1.msra.mxu0 %v167
    %1357 = vmatprep.subr.mxu0 0.0
    %1358 = vmatpush1.msra.mxu0 0.0
    %1359 = vmatprep.subr.mxu0 0.0
    %1360 = vmatpush1.msra.mxu0 0.0
    %1361 = vmatprep.subr.mxu0 0.0
    %1362 = vmatpush1.msra.mxu0 0.0
    %1363 = vmatprep.subr.mxu0 0.0
    %1364 = vmatpush1.msra.mxu0 0.0
    %1365 = vmatprep.subr.mxu0 0.0
    %1366 = vmatpush1.msra.mxu0 0.0
    %1367 = vmatprep.subr.mxu0 0.0
    %1368 = vmatpush1.msra.mxu0 0.0
    %1369 = vmatprep.subr.mxu0 0.0
    %1370 = vmatpush1.msra.mxu0 0.0
    %1371 = vmatprep.subr.mxu0 0.0
    %1372 = vmatpush1.msra.mxu0 0.0
    %1373 = vmatprep.subr.mxu0 0.0
    %1374 = vmatpush1.msra.mxu0 0.0
    %1375 = vmatprep.subr.mxu0 0.0
    %1376 = vmatpush1.msra.mxu0 0.0
    %1377 = vmatprep.subr.mxu0 0.0
    %1378 = vmatpush1.msra.mxu0 0.0
    %1379 = vmatprep.subr.mxu0 0.0
    %1380 = vmatpush1.msra.mxu0 0.0
    %1381 = vmatprep.subr.mxu0 0.0
    %1382 = vmatpush1.msra.mxu0 0.0
    %1383 = vmatprep.subr.mxu0 0.0
    %1384 = vmatpush1.msra.mxu0 0.0
    %1385 = vmatprep.subr.mxu0 0.0
    %1386 = vmatpush1.msra.mxu0 0.0
    %1387 = vmatprep.subr.mxu0 0.0
    %1388 = vmatpush1.msra.mxu0 0.0
    %1389 = vmatprep.mubr.f32.mxu0 0.0
    %1390 = vmatmul.mubr.f32.gmra.mrb[0].mxu0 %v1324
    %v1391 = vpop.f32.mrb[0].mxu0
    %v1392 = vadd.f32 0.0, %v1391
    %v1393 = vpop.f32.mrb[0].mxu0
    %1394 = vdwg.mxu0
    %v1395 = vadd.f32 %v1236, %v1392
    %v1396 = vtanh.pop %v1395
    %v1397 = vmul.f32 %v1323, %v1396
    %v1398 = vsub.f32 1.0, %v1323
    %v1399 = vadd.f32 %v1397, %v1398
    %v1400 = vadd.f32 %v1399, %v1092
    %v1401 = vld [vmem:[%s1] sm:$0xff]
    %v1403 = vsel %vm170, %v1401, 0
    %1405 = vmatprep.subr.mxu0 %v89
    %1406 = vmatpush1.msra.mxu0 %v88
    %1407 = vmatprep.subr.mxu0 %v93
    %1408 = vmatpush1.msra.mxu0 %v92
    %1409 = vmatprep.subr.mxu0 %v97
    %1410 = vmatpush1.msra.mxu0 %v96
    %1411 = vmatprep.subr.mxu0 %v101
    %1412 = vmatpush1.msra.mxu0 %v100
    %1413 = vmatprep.subr.mxu0 %v105
    %1414 = vmatpush1.msra.mxu0 %v104
    %1415 = vmatprep.subr.mxu0 %v109
    %1416 = vmatpush1.msra.mxu0 %v108
    %1417 = vmatprep.subr.mxu0 %v113
    %1418 = vmatpush1.msra.mxu0 %v112
    %1419 = vmatprep.subr.mxu0 %v117
    %1420 = vmatpush1.msra.mxu0 %v116
    %1421 = vmatprep.subr.mxu0 0.0
    %1422 = vmatpush1.msra.mxu0 0.0
    %1423 = vmatprep.subr.mxu0 0.0
    %1424 = vmatpush1.msra.mxu0 0.0
    %1425 = vmatprep.subr.mxu0 0.0
    %1426 = vmatpush1.msra.mxu0 0.0
    %1427 = vmatprep.subr.mxu0 0.0
    %1428 = vmatpush1.msra.mxu0 0.0
    %1429 = vmatprep.subr.mxu0 0.0
    %1430 = vmatpush1.msra.mxu0 0.0
    %1431 = vmatprep.subr.mxu0 0.0
    %1432 = vmatpush1.msra.mxu0 0.0
    %1433 = vmatprep.subr.mxu0 0.0
    %1434 = vmatpush1.msra.mxu0 0.0
    %1435 = vmatprep.subr.mxu0 0.0
    %1436 = vmatpush1.msra.mxu0 0.0
    %1437 = vmatprep.subr.mxu0 0.0
    %1438 = vmatpush1.msra.mxu0 0.0
    %1439 = vmatprep.subr.mxu0 0.0
    %1440 = vmatpush1.msra.mxu0 0.0
    %1441 = vmatprep.subr.mxu0 0.0
    %1442 = vmatpush1.msra.mxu0 0.0
    %1443 = vmatprep.subr.mxu0 0.0
    %1444 = vmatpush1.msra.mxu0 0.0
    %1445 = vmatprep.subr.mxu0 0.0
    %1446 = vmatpush1.msra.mxu0 0.0
    %1447 = vmatprep.subr.mxu0 0.0
    %1448 = vmatpush1.msra.mxu0 0.0
    %1449 = vmatprep.subr.mxu0 0.0
    %1450 = vmatpush1.msra.mxu0 0.0
    %1451 = vmatprep.subr.mxu0 0.0
    %1452 = vmatpush1.msra.mxu0 0.0
    %1453 = vmatprep.subr.mxu0 0.0
    %1454 = vmatpush1.msra.mxu0 0.0
    %1455 = vmatprep.subr.mxu0 0.0
    %1456 = vmatpush1.msra.mxu0 0.0
    %1457 = vmatprep.subr.mxu0 0.0
    %1458 = vmatpush1.msra.mxu0 0.0
    %1459 = vmatprep.subr.mxu0 0.0
    %1460 = vmatpush1.msra.mxu0 0.0
    %1461 = vmatprep.subr.mxu0 0.0
    %1462 = vmatpush1.msra.mxu0 0.0
    %1463 = vmatprep.subr.mxu0 0.0
    %1464 = vmatpush1.msra.mxu0 0.0
    %1465 = vmatprep.subr.mxu0 0.0
    %1466 = vmatpush1.msra.mxu0 0.0
    %1467 = vmatprep.subr.mxu0 0.0
    %1468 = vmatpush1.msra.mxu0 0.0
    %1469 = vmatprep.mubr.f32.mxu0 0.0
    %1470 = vmatmul.mubr.f32.gmra.mrb[0].mxu0 %v1403
    %v1471 = vpop.f32.mrb[0].mxu0
    %v1472 = vadd.f32 0.0, %v1471
    %v1473 = vpop.f32.mrb[0].mxu0
    %v1474 = vadd.f32 0.0, %v1473
    %1475 = vdwg.mxu0
    %1476 = vmatprep.subr.mxu0 %v91
    %1477 = vmatpush1.msra.mxu0 %v90
    %1478 = vmatprep.subr.mxu0 %v95
    %1479 = vmatpush1.msra.mxu0 %v94
    %1480 = vmatprep.subr.mxu0 %v99
    %1481 = vmatpush1.msra.mxu0 %v98
    %1482 = vmatprep.subr.mxu0 %v103
    %1483 = vmatpush1.msra.mxu0 %v102
    %1484 = vmatprep.subr.mxu0 %v107
    %1485 = vmatpush1.msra.mxu0 %v106
    %1486 = vmatprep.subr.mxu0 %v111
    %1487 = vmatpush1.msra.mxu0 %v110
    %1488 = vmatprep.subr.mxu0 %v115
    %1489 = vmatpush1.msra.mxu0 %v114
    %1490 = vmatprep.subr.mxu0 %v119
    %1491 = vmatpush1.msra.mxu0 %v118
    %1492 = vmatprep.subr.mxu0 0.0
    %1493 = vmatpush1.msra.mxu0 0.0
    %1494 = vmatprep.subr.mxu0 0.0
    %1495 = vmatpush1.msra.mxu0 0.0
    %1496 = vmatprep.subr.mxu0 0.0
    %1497 = vmatpush1.msra.mxu0 0.0
    %1498 = vmatprep.subr.mxu0 0.0
    %1499 = vmatpush1.msra.mxu0 0.0
    %1500 = vmatprep.subr.mxu0 0.0
    %1501 = vmatpush1.msra.mxu0 0.0
    %1502 = vmatprep.subr.mxu0 0.0
    %1503 = vmatpush1.msra.mxu0 0.0
    %1504 = vmatprep.subr.mxu0 0.0
    %1505 = vmatpush1.msra.mxu0 0.0
    %1506 = vmatprep.subr.mxu0 0.0
    %1507 = vmatpush1.msra.mxu0 0.0
    %1508 = vmatprep.subr.mxu0 0.0
    %1509 = vmatpush1.msra.mxu0 0.0
    %1510 = vmatprep.subr.mxu0 0.0
    %1511 = vmatpush1.msra.mxu0 0.0
    %1512 = vmatprep.subr.mxu0 0.0
    %1513 = vmatpush1.msra.mxu0 0.0
    %1514 = vmatprep.subr.mxu0 0.0
    %1515 = vmatpush1.msra.mxu0 0.0
    %1516 = vmatprep.subr.mxu0 0.0
    %1517 = vmatpush1.msra.mxu0 0.0
    %1518 = vmatprep.subr.mxu0 0.0
    %1519 = vmatpush1.msra.mxu0 0.0
    %1520 = vmatprep.subr.mxu0 0.0
    %1521 = vmatpush1.msra.mxu0 0.0
    %1522 = vmatprep.subr.mxu0 0.0
    %1523 = vmatpush1.msra.mxu0 0.0
    %1524 = vmatprep.subr.mxu0 0.0
    %1525 = vmatpush1.msra.mxu0 0.0
    %1526 = vmatprep.subr.mxu0 0.0
    %1527 = vmatpush1.msra.mxu0 0.0
    %1528 = vmatprep.subr.mxu0 0.0
    %1529 = vmatpush1.msra.mxu0 0.0
    %1530 = vmatprep.subr.mxu0 0.0
    %1531 = vmatpush1.msra.mxu0 0.0
    %1532 = vmatprep.subr.mxu0 0.0
    %1533 = vmatpush1.msra.mxu0 0.0
    %1534 = vmatprep.subr.mxu0 0.0
    %1535 = vmatpush1.msra.mxu0 0.0
    %1536 = vmatprep.subr.mxu0 0.0
    %1537 = vmatpush1.msra.mxu0 0.0
    %1538 = vmatprep.subr.mxu0 0.0
    %1539 = vmatpush1.msra.mxu0 0.0
    %1540 = vmatprep.mubr.f32.mxu0 0.0
    %1541 = vmatmul.mubr.f32.gmra.mrb[0].mxu0 %v1403
    %v1542 = vpop.f32.mrb[0].mxu0
    %v1543 = vadd.f32 0.0, %v1542
    %v1544 = vpop.f32.mrb[0].mxu0
    %v1545 = vadd.f32 0.0, %v1544
    %1546 = vdwg.mxu0
    %1547 = vmatprep.subr.mxu0 %v121
    %1548 = vmatpush1.msra.mxu0 %v120
    %1549 = vmatprep.subr.mxu0 %v123
    %1550 = vmatpush1.msra.mxu0 %v122
    %1551 = vmatprep.subr.mxu0 %v125
    %1552 = vmatpush1.msra.mxu0 %v124
    %1553 = vmatprep.subr.mxu0 %v127
    %1554 = vmatpush1.msra.mxu0 %v126
    %1555 = vmatprep.subr.mxu0 %v129
    %1556 = vmatpush1.msra.mxu0 %v128
    %1557 = vmatprep.subr.mxu0 %v131
    %1558 = vmatpush1.msra.mxu0 %v130
    %1559 = vmatprep.subr.mxu0 %v133
    %1560 = vmatpush1.msra.mxu0 %v132
    %1561 = vmatprep.subr.mxu0 %v135
    %1562 = vmatpush1.msra.mxu0 %v134
    %1563 = vmatprep.subr.mxu0 %v137
    %1564 = vmatpush1.msra.mxu0 %v136
    %1565 = vmatprep.subr.mxu0 %v139
    %1566 = vmatpush1.msra.mxu0 %v138
    %1567 = vmatprep.subr.mxu0 %v141
    %1568 = vmatpush1.msra.mxu0 %v140
    %1569 = vmatprep.subr.mxu0 %v143
    %1570 = vmatpush1.msra.mxu0 %v142
    %1571 = vmatprep.subr.mxu0 %v145
    %1572 = vmatpush1.msra.mxu0 %v144
    %1573 = vmatprep.subr.mxu0 %v147
    %1574 = vmatpush1.msra.mxu0 %v146
    %1575 = vmatprep.subr.mxu0 %v149
    %1576 = vmatpush1.msra.mxu0 %v148
    %1577 = vmatprep.subr.mxu0 %v151
    %1578 = vmatpush1.msra.mxu0 %v150
    %1579 = vmatprep.subr.mxu0 0.0
    %1580 = vmatpush1.msra.mxu0 0.0
    %1581 = vmatprep.subr.mxu0 0.0
    %1582 = vmatpush1.msra.mxu0 0.0
    %1583 = vmatprep.subr.mxu0 0.0
    %1584 = vmatpush1.msra.mxu0 0.0
    %1585 = vmatprep.subr.mxu0 0.0
    %1586 = vmatpush1.msra.mxu0 0.0
    %1587 = vmatprep.subr.mxu0 0.0
    %1588 = vmatpush1.msra.mxu0 0.0
    %1589 = vmatprep.subr.mxu0 0.0
    %1590 = vmatpush1.msra.mxu0 0.0
    %1591 = vmatprep.subr.mxu0 0.0
    %1592 = vmatpush1.msra.mxu0 0.0
    %1593 = vmatprep.subr.mxu0 0.0
    %1594 = vmatpush1.msra.mxu0 0.0
    %1595 = vmatprep.subr.mxu0 0.0
    %1596 = vmatpush1.msra.mxu0 0.0
    %1597 = vmatprep.subr.mxu0 0.0
    %1598 = vmatpush1.msra.mxu0 0.0
    %1599 = vmatprep.subr.mxu0 0.0
    %1600 = vmatpush1.msra.mxu0 0.0
    %1601 = vmatprep.subr.mxu0 0.0
    %1602 = vmatpush1.msra.mxu0 0.0
    %1603 = vmatprep.subr.mxu0 0.0
    %1604 = vmatpush1.msra.mxu0 0.0
    %1605 = vmatprep.subr.mxu0 0.0
    %1606 = vmatpush1.msra.mxu0 0.0
    %1607 = vmatprep.subr.mxu0 0.0
    %1608 = vmatpush1.msra.mxu0 0.0
    %1609 = vmatprep.subr.mxu0 0.0
    %1610 = vmatpush1.msra.mxu0 0.0
    %1611 = vmatprep.mubr.f32.mxu0 0.0
    %1612 = vmatmul.mubr.f32.gmra.mrb[0].mxu0 %v1400
    %v1613 = vpop.f32.mrb[0].mxu0
    %v1614 = vadd.f32 0.0, %v1613
    %v1615 = vpop.f32.mrb[0].mxu0
    %v1616 = vadd.f32 0.0, %v1615
    %1617 = vdwg.mxu0
    %v1618 = vadd.f32 %v1472, %v1614
    %v1619 = vadd.f32 %v1474, %v1616
    %v1620 = vxor.u32 %v1618, 2147483648
    %v1621 = vxor.u32 %v1619, 2147483648
    %v1622 = vmul.f32 %v1620, 1.442695
    %v1623 = vpow.pop %v1622
    %v1624 = vmul.f32 %v1621, 1.442695
    %v1625 = vpow.pop %v1624
    %v1626 = vadd.f32 %v1623, 1.0
    %v1627 = vadd.f32 %v1625, 1.0
    %v1628 = vrcp.pop %v1626
    %v1629 = vmul.f32 1.0, %v1628
    %v1630 = vrcp.pop %v1627
    %v1631 = vmul.f32 1.0, %v1630
    %v1632 = vmul.f32 %v1400, %v1629
    %1633 = vmatprep.subr.mxu0 0.0
    %1634 = vmatpush1.msra.mxu0 %v152
    %1635 = vmatprep.subr.mxu0 0.0
    %1636 = vmatpush1.msra.mxu0 %v153
    %1637 = vmatprep.subr.mxu0 0.0
    %1638 = vmatpush1.msra.mxu0 %v154
    %1639 = vmatprep.subr.mxu0 0.0
    %1640 = vmatpush1.msra.mxu0 %v155
    %1641 = vmatprep.subr.mxu0 0.0
    %1642 = vmatpush1.msra.mxu0 %v156
    %1643 = vmatprep.subr.mxu0 0.0
    %1644 = vmatpush1.msra.mxu0 %v157
    %1645 = vmatprep.subr.mxu0 0.0
    %1646 = vmatpush1.msra.mxu0 %v158
    %1647 = vmatprep.subr.mxu0 0.0
    %1648 = vmatpush1.msra.mxu0 %v159
    %1649 = vmatprep.subr.mxu0 0.0
    %1650 = vmatpush1.msra.mxu0 %v160
    %1651 = vmatprep.subr.mxu0 0.0
    %1652 = vmatpush1.msra.mxu0 %v161
    %1653 = vmatprep.subr.mxu0 0.0
    %1654 = vmatpush1.msra.mxu0 %v162
    %1655 = vmatprep.subr.mxu0 0.0
    %1656 = vmatpush1.msra.mxu0 %v163
    %1657 = vmatprep.subr.mxu0 0.0
    %1658 = vmatpush1.msra.mxu0 %v164
    %1659 = vmatprep.subr.mxu0 0.0
    %1660 = vmatpush1.msra.mxu0 %v165
    %1661 = vmatprep.subr.mxu0 0.0
    %1662 = vmatpush1.msra.mxu0 %v166
    %1663 = vmatprep.subr.mxu0 0.0
    %1664 = vmatpush1.msra.mxu0 %v167
    %1665 = vmatprep.subr.mxu0 0.0
    %1666 = vmatpush1.msra.mxu0 0.0
    %1667 = vmatprep.subr.mxu0 0.0
    %1668 = vmatpush1.msra.mxu0 0.0
    %1669 = vmatprep.subr.mxu0 0.0
    %1670 = vmatpush1.msra.mxu0 0.0
    %1671 = vmatprep.subr.mxu0 0.0
    %1672 = vmatpush1.msra.mxu0 0.0
    %1673 = vmatprep.subr.mxu0 0.0
    %1674 = vmatpush1.msra.mxu0 0.0
    %1675 = vmatprep.subr.mxu0 0.0
    %1676 = vmatpush1.msra.mxu0 0.0
    %1677 = vmatprep.subr.mxu0 0.0
    %1678 = vmatpush1.msra.mxu0 0.0
    %1679 = vmatprep.subr.mxu0 0.0
    %1680 = vmatpush1.msra.mxu0 0.0
    %1681 = vmatprep.subr.mxu0 0.0
    %1682 = vmatpush1.msra.mxu0 0.0
    %1683 = vmatprep.subr.mxu0 0.0
    %1684 = vmatpush1.msra.mxu0 0.0
    %1685 = vmatprep.subr.mxu0 0.0
    %1686 = vmatpush1.msra.mxu0 0.0
    %1687 = vmatprep.subr.mxu0 0.0
    %1688 = vmatpush1.msra.mxu0 0.0
    %1689 = vmatprep.subr.mxu0 0.0
    %1690 = vmatpush1.msra.mxu0 0.0
    %1691 = vmatprep.subr.mxu0 0.0
    %1692 = vmatpush1.msra.mxu0 0.0
    %1693 = vmatprep.subr.mxu0 0.0
    %1694 = vmatpush1.msra.mxu0 0.0
    %1695 = vmatprep.subr.mxu0 0.0
    %1696 = vmatpush1.msra.mxu0 0.0
    %1697 = vmatprep.mubr.f32.mxu0 0.0
    %1698 = vmatmul.mubr.f32.gmra.mrb[0].mxu0 %v1632
    %v1699 = vpop.f32.mrb[0].mxu0
    %v1700 = vadd.f32 0.0, %v1699
    %v1701 = vpop.f32.mrb[0].mxu0
    %1702 = vdwg.mxu0
    %v1703 = vadd.f32 %v1543, %v1700
    %v1704 = vtanh.pop %v1703
    %v1705 = vmul.f32 %v1631, %v1704
    %v1706 = vsub.f32 1.0, %v1631
    %v1707 = vadd.f32 %v1705, %v1706
    %v1708 = vadd.f32 %v1707, %v1400
    %1709 = vst [vmem:[#allocation11] sm:$0xff] %v1708
    %v1710 = vld [vmem:[#allocation8] sm:$0xff]
    %v1711 = vld [vmem:[#allocation8 + $0x8] sm:$0xff]
    %v1712 = vld [vmem:[#allocation8 + $0x10] sm:$0xff]
    %v1713 = vld [vmem:[#allocation8 + $0x18] sm:$0xff]
    %v1714 = vld [vmem:[#allocation8 + $0x20] sm:$0xff]
    %v1715 = vld [vmem:[#allocation8 + $0x28] sm:$0xff]
    %v1716 = vld [vmem:[#allocation8 + $0x30] sm:$0xff]
    %v1717 = vld [vmem:[#allocation8 + $0x38] sm:$0xff]
    %v1718 = vld [vmem:[#allocation8 + $0x40] sm:$0xff]
    %v1719 = vld [vmem:[#allocation8 + $0x48] sm:$0xff]
    %v1720 = vld [vmem:[#allocation8 + $0x50] sm:$0xff]
    %v1721 = vld [vmem:[#allocation8 + $0x58] sm:$0xff]
    %v1722 = vld [vmem:[#allocation8 + $0x60] sm:$0xff]
    %v1723 = vld [vmem:[#allocation8 + $0x68] sm:$0xff]
    %v1724 = vld [vmem:[#allocation8 + $0x70] sm:$0xff]
    %v1725 = vld [vmem:[#allocation8 + $0x78] sm:$0xff]
    %v1726 = vld [vmem:[%s7] sm:$0x1]
    %1727 = vmatprep.subr.mxu0 0.0
    %1728 = vmatpush1.msra.mxu0 %v1710
    %1729 = vmatprep.subr.mxu0 0.0
    %1730 = vmatpush1.msra.mxu0 %v1711
    %1731 = vmatprep.subr.mxu0 0.0
    %1732 = vmatpush1.msra.mxu0 %v1712
    %1733 = vmatprep.subr.mxu0 0.0
    %1734 = vmatpush1.msra.mxu0 %v1713
    %1735 = vmatprep.subr.mxu0 0.0
    %1736 = vmatpush1.msra.mxu0 %v1714
    %1737 = vmatprep.subr.mxu0 0.0
    %1738 = vmatpush1.msra.mxu0 %v1715
    %1739 = vmatprep.subr.mxu0 0.0
    %1740 = vmatpush1.msra.mxu0 %v1716
    %1741 = vmatprep.subr.mxu0 0.0
    %1742 = vmatpush1.msra.mxu0 %v1717
    %1743 = vmatprep.subr.mxu0 0.0
    %1744 = vmatpush1.msra.mxu0 %v1718
    %1745 = vmatprep.subr.mxu0 0.0
    %1746 = vmatpush1.msra.mxu0 %v1719
    %1747 = vmatprep.subr.mxu0 0.0
    %1748 = vmatpush1.msra.mxu0 %v1720
    %1749 = vmatprep.subr.mxu0 0.0
    %1750 = vmatpush1.msra.mxu0 %v1721
    %1751 = vmatprep.subr.mxu0 0.0
    %1752 = vmatpush1.msra.mxu0 %v1722
    %1753 = vmatprep.subr.mxu0 0.0
    %1754 = vmatpush1.msra.mxu0 %v1723
    %1755 = vmatprep.subr.mxu0 0.0
    %1756 = vmatpush1.msra.mxu0 %v1724
    %1757 = vmatprep.subr.mxu0 0.0
    %1758 = vmatpush1.msra.mxu0 %v1725
    %1759 = vmatprep.subr.mxu0 0.0
    %1760 = vmatpush1.msra.mxu0 0.0
    %1761 = vmatprep.subr.mxu0 0.0
    %1762 = vmatpush1.msra.mxu0 0.0
    %1763 = vmatprep.subr.mxu0 0.0
    %1764 = vmatpush1.msra.mxu0 0.0
    %1765 = vmatprep.subr.mxu0 0.0
    %1766 = vmatpush1.msra.mxu0 0.0
    %1767 = vmatprep.subr.mxu0 0.0
    %1768 = vmatpush1.msra.mxu0 0.0
    %1769 = vmatprep.subr.mxu0 0.0
    %1770 = vmatpush1.msra.mxu0 0.0
    %1771 = vmatprep.subr.mxu0 0.0
    %1772 = vmatpush1.msra.mxu0 0.0
    %1773 = vmatprep.subr.mxu0 0.0
    %1774 = vmatpush1.msra.mxu0 0.0
    %1775 = vmatprep.subr.mxu0 0.0
    %1776 = vmatpush1.msra.mxu0 0.0
    %1777 = vmatprep.subr.mxu0 0.0
    %1778 = vmatpush1.msra.mxu0 0.0
    %1779 = vmatprep.subr.mxu0 0.0
    %1780 = vmatpush1.msra.mxu0 0.0
    %1781 = vmatprep.subr.mxu0 0.0
    %1782 = vmatpush1.msra.mxu0 0.0
    %1783 = vmatprep.subr.mxu0 0.0
    %1784 = vmatpush1.msra.mxu0 0.0
    %1785 = vmatprep.subr.mxu0 0.0
    %1786 = vmatpush1.msra.mxu0 0.0
    %1787 = vmatprep.subr.mxu0 0.0
    %1788 = vmatpush1.msra.mxu0 0.0
    %1789 = vmatprep.subr.mxu0 0.0
    %1790 = vmatpush1.msra.mxu0 0.0
    %1791 = vmatprep.mubr.f32.mxu0 0.0
    %1792 = vmatmul.mubr.f32.gmra.mrb[0].mxu0 %v1708
    %v1793 = vpop.f32.mrb[0].mxu0
    %v1794 = vadd.f32 0.0, %v1793
    %v1795 = vpop.f32.mrb[0].mxu0
    %1796 = vdwg.mxu0
    %v1797 = vadd.f32 %v1545, %v1794
    %v1799 = vlaneseq
    %v1800 = vshrl.u32 %v1799, 7
    %v1801 = vsub.s32 0, %v1800
    %v1802 = vrot.slane %v1726, %v1801
    %v1804 = vadd.f32 %v1797, %v1802
    %v1805 = vmax.f32 %v1804, 0.0
    %v1806 = vlaneseq
    %v1807 = vand.u32 %v1806, 127
    %vm1808 = vcmp.lt.s32.totalorder %v1807, 16
    %v1809 = vsel %vm1808, %v1805, -1e+30
    %1810 = vmax.xlane.f32.xlu0 %v1809
    %v1811 = vpop.xlane.xlu0 %1810
    %v1812 = vsub.f32 %v1809, %v1811
    %v1813 = vmul.f32 %v1812, 1.442695
    %v1814 = vpow.pop %v1813
    %1815 = vadd.xlane.f32.xlu0 %v1814
    %v1816 = vpop.xlane.xlu0 %1815
    %v1817 = vrcp.pop %v1816
    %v1818 = vmul.f32 %v1814, %v1817
    %1819 = vst [vmem:[#allocation10] sm:$0xff] %v1818
    // Predicated region
    $region50: #{_forward_batched.1} parent=1 // pred_check
      _
    $region51: #{_forward_batched.1} parent=1 // pred_check_branch
      %1821 = sbr.rel (0) target = $region53
    $region52: #{_forward_batched.1} parent=1 // pred_region
      %s1823 = ssub.s32 128, 128
      %1824 = vsyncadd [#allocation4], %s1823
      %s1826 = sshll.u32 [#allocation10], 4
      %s1827 = int_to_ptr.vmem [resolvable:$true] %s1826
      %1829 = dma.vmem_to_hbm [thread:$0]  %s1827, 128, %s8, [#allocation4]
    $region53: #{_forward_batched.1} parent=1 // pred_fallthru
      _
    // Predicated region
    $region54: #{_forward_batched.1} parent=1 // pred_check
      _
    $region55: #{_forward_batched.1} parent=1 // pred_check_branch
      %1831 = sbr.rel (0) target = $region57
    $region56: #{_forward_batched.1} parent=1 // pred_region
      %s1833 = ssub.s32 128, 128
      %1834 = vsyncadd [#allocation12], %s1833
      %s1836 = sshll.u32 [#allocation11], 4
      %s1837 = int_to_ptr.vmem [resolvable:$true] %s1836
      %1839 = dma.vmem_to_hbm [thread:$0]  %s1837, 128, %s9, [#allocation12]
    $region57: #{_forward_batched.1} parent=1 // pred_fallthru
      _
    // Predicated region
    $region58: #{_forward_batched.1} parent=1 // pred_check
      _
    $region59: #{_forward_batched.1} parent=1 // pred_check_branch
      %1841 = sbr.rel (0) target = $region61
    $region60: #{_forward_batched.1} parent=1 // pred_region
      %1842 = dma.done [#allocation4], 128
    $region61: #{_forward_batched.1} parent=1 // pred_fallthru
      _
    // Predicated region
    $region62: #{_forward_batched.1} parent=1 // pred_check
      _
    $region63: #{_forward_batched.1} parent=1 // pred_check_branch
      %1844 = sbr.rel (0) target = $region65
    $region64: #{_forward_batched.1} parent=1 // pred_region
      %1845 = dma.done [#allocation12], 128
    $region65: #{_forward_batched.1} parent=1 // pred_fallthru
      _
    %1846 = vsyncpa [#allocation3], 1
    %1847 = vsyncpa [#allocation6], 1
    %1848 = vsyncpa [#allocation9], 1
    %1849 = vsyncpa [#allocation4], 1
    %1850 = vsyncpa [#allocation12], 1

</llo_original>
